<compile_context>
chip_gen: v5e
topology: v5e:2x2
jax: 0.10.0
libtpu: 0.0.40
codegen_flags: <defaults>
</compile_context>

<pallas_src>
import numpy as np

import jax
import jax.numpy as jnp
from jax.experimental import pallas as pl
from jax.experimental.pallas import tpu as pltpu

CAPACITY = 8        # TrainingParams.capacity
LATENT_DIMS = 16    # TrainingParams.latent_dims

# Static sizes implied by the module (fc_in = 2c*7*7 => 1x28x28 input).
H_IN = 28
KS, STRIDE, PAD = 4, 2, 1
H1 = (H_IN + 2 * PAD - KS) // STRIDE + 1      # 14
H2 = (H1 + 2 * PAD - KS) // STRIDE + 1        # 7
KK = KS * KS                                  # 16 kernel taps
P1 = H1 * H1                                  # 196 conv1 output pixels
P2 = H2 * H2                                  # 49  conv2 output pixels
C1 = CAPACITY                                 # 8
C2 = 2 * CAPACITY                             # 16
K2 = KK * C1                                  # 128 conv2 GEMM K dim
NOUT = 2 * LATENT_DIMS                        # 32  fused mu|logvar


# ---------------------------------------------------------------------------
# Fused encoder kernel: one image per grid step, everything VMEM-resident.
# ---------------------------------------------------------------------------
def encoder_fused_kernel(p1t_ref, w1t_ref, b1_ref, sel_ref, w2t_ref, b2_ref,
                         wfc_ref, bfc_ref, o_ref, p2t_ref):
    # ---- conv1: (C1, KK) @ (KK, P1) + b1, relu -> y1t (C1, 196) ----------
    y1t = jnp.dot(w1t_ref[...], p1t_ref[0],
                  preferred_element_type=jnp.float32)
    y1t = jnp.maximum(y1t + b1_ref[...], 0.0)

    # ---- conv2 "im2col" in-kernel: gather-via-matmul per kernel tap ------
    # sel[t] is a constant 0/1 (P1, P2) matrix selecting (or zero-padding)
    # the stride-2 source pixel of each conv2 output pixel for tap t.
    for t in range(KK):
        p2t_ref[t * C1:(t + 1) * C1, :] = jnp.dot(
            y1t, sel_ref[t], preferred_element_type=jnp.float32)

    # ---- conv2: (C2, K2) @ (K2, P2) + b2, relu -> y2t (C2, 49) -----------
    y2t = jnp.dot(w2t_ref[...], p2t_ref[...],
                  preferred_element_type=jnp.float32)
    y2t = jnp.maximum(y2t + b2_ref[...], 0.0)

    # ---- fc_mu | fc_logvar (fused): out[l] = sum_c sum_p y2t[c,p]*W[c,p,l]
    # Unrolled over the 16 channels -> 16 tiny MXU dots, no in-kernel flatten.
    acc = bfc_ref[...]                                       # (1, NOUT) f32
    for c in range(C2):
        acc = acc + jnp.dot(y2t[c:c + 1, :], wfc_ref[c],
                            preferred_element_type=jnp.float32)
    o_ref[0] = acc


# ---------------------------------------------------------------------------
# Constant selection tensor for conv2's stride-2, pad-1, k=4 window gather.
# ---------------------------------------------------------------------------
def build_conv2_selection():
    sel = np.zeros((KK, P1, P2), np.float32)
    for kh in range(KS):
        for kw in range(KS):
            t = kh * KS + kw
            for oh in range(H2):
                for ow in range(W2 := H2):
                    ih = oh * STRIDE + kh - PAD
                    iw = ow * STRIDE + kw - PAD
                    if 0 <= ih < H1 and 0 <= iw < H1:
                        sel[t, ih * H1 + iw, oh * H2 + ow] = 1.0
    return jnp.asarray(sel)


# ---------------------------------------------------------------------------
# One-time weight packing (hoisted out of the forward): all layout
# permutations folded into the parameters, mu/logvar weights fused.
# ---------------------------------------------------------------------------
def prepare_params(p):
    c, ld = CAPACITY, LATENT_DIMS
    f32 = jnp.float32

    # conv1: (O, 1, 4, 4) -> (O, KK)   columns ordered (kh, kw)
    w1t = p["conv1_w"].reshape(c, KK).astype(f32)
    b1 = p["conv1_b"].reshape(c, 1).astype(f32)

    # conv2: (O, I, 4, 4) -> (O, (kh, kw, ci)) = (C2, K2)
    w2t = p["conv2_w"].transpose(0, 2, 3, 1).reshape(2 * c, K2).astype(f32)
    b2 = p["conv2_b"].reshape(2 * c, 1).astype(f32)

    # fc_mu | fc_logvar fused: torch flat order is (co, oh, ow) -> co*49 + p.
    wcat = jnp.concatenate([p["fc_mu_w"], p["fc_logvar_w"]], axis=0)  # (32, 784)
    wfc3 = wcat.reshape(NOUT, C2, P2).transpose(1, 2, 0).astype(f32)  # (C2, P2, NOUT)
    bfc = jnp.concatenate([p["fc_mu_b"], p["fc_logvar_b"]]).reshape(1, NOUT).astype(f32)

    return {"w1t": w1t, "b1": b1, "w2t": w2t, "b2": b2,
            "wfc3": wfc3, "bfc": bfc, "sel": build_conv2_selection()}


# ---------------------------------------------------------------------------
# Encoder forward: single fused Pallas call over the batch.
# ---------------------------------------------------------------------------
def encoder_forward(x, pp):
    N = x.shape[0]
    assert x.shape[1:] == (1, H_IN, H_IN), "Encoder expects 1x28x28 input"

    # conv1 patch extraction on the raw input (transposed: taps x pixels).
    # TODO(synk): move this stride-2 window build in-kernel as well.
    xi = x.reshape(N, H_IN, H_IN).astype(jnp.float32)       # C==1: free reshape
    xp = jnp.pad(xi, ((0, 0), (PAD, PAD), (PAD, PAD)))
    taps = [xp[:, kh:kh + STRIDE * H1:STRIDE, kw:kw + STRIDE * H1:STRIDE]
            for kh in range(KS) for kw in range(KS)]
    p1t = jnp.stack(taps, axis=1).reshape(N, KK, P1)        # (N, 16, 196)

    out = pl.pallas_call(
        encoder_fused_kernel,
        out_shape=jax.ShapeDtypeStruct((N, 1, NOUT), jnp.float32),
        grid=(N,),
        in_specs=[
            pl.BlockSpec((1, KK, P1), lambda i: (i, 0, 0)),      # per-image patches
            pl.BlockSpec((C1, KK), lambda i: (0, 0)),            # w1t  (resident)
            pl.BlockSpec((C1, 1), lambda i: (0, 0)),             # b1
            pl.BlockSpec((KK, P1, P2), lambda i: (0, 0, 0)),     # sel
            pl.BlockSpec((C2, K2), lambda i: (0, 0)),            # w2t
            pl.BlockSpec((C2, 1), lambda i: (0, 0)),             # b2
            pl.BlockSpec((C2, P2, NOUT), lambda i: (0, 0, 0)),   # wfc3
            pl.BlockSpec((1, NOUT), lambda i: (0, 0)),           # bfc
        ],
        out_specs=pl.BlockSpec((1, 1, NOUT), lambda i: (i, 0, 0)),
        scratch_shapes=[pltpu.VMEM((K2, P2), jnp.float32)],      # conv2 patches
        compiler_params=pltpu.CompilerParams(
            dimension_semantics=("parallel",)),
    )(p1t, pp["w1t"], pp["b1"], pp["sel"], pp["w2t"], pp["b2"],
      pp["wfc3"], pp["bfc"])

    out = out.reshape(N, NOUT)
    return out[:, :LATENT_DIMS], out[:, LATENT_DIMS:]


# ---------------------------------------------------------------------------
# Torch-layout params + plain-JAX reference (numeric check)
# ---------------------------------------------------------------------------
def init_params(key):
    c, ld = CAPACITY, LATENT_DIMS
    feat = 2 * c * 7 * 7
    ks = jax.random.split(key, 8)
    s = 0.05
    return {
        "conv1_w": s * jax.random.normal(ks[0], (c, 1, 4, 4), jnp.float32),
        "conv1_b": s * jax.random.normal(ks[1], (c,), jnp.float32),
        "conv2_w": s * jax.random.normal(ks[2], (2 * c, c, 4, 4), jnp.float32),
        "conv2_b": s * jax.random.normal(ks[3], (2 * c,), jnp.float32),
        "fc_mu_w": s * jax.random.normal(ks[4], (ld, feat), jnp.float32),
        "fc_mu_b": s * jax.random.normal(ks[5], (ld,), jnp.float32),
        "fc_logvar_w": s * jax.random.normal(ks[6], (ld, feat), jnp.float32),
        "fc_logvar_b": s * jax.random.normal(ks[7], (ld,), jnp.float32),
    }


def encoder_reference(x, p):
    dn = ("NCHW", "OIHW", "NCHW")
    y = jax.lax.conv_general_dilated(x, p["conv1_w"], (2, 2),
                                     ((1, 1), (1, 1)), dimension_numbers=dn)
    y = jax.nn.relu(y + p["conv1_b"].reshape(1, -1, 1, 1))
    y = jax.lax.conv_general_dilated(y, p["conv2_w"], (2, 2),
                                     ((1, 1), (1, 1)), dimension_numbers=dn)
    y = jax.nn.relu(y + p["conv2_b"].reshape(1, -1, 1, 1))
    flat = y.reshape(x.shape[0], -1)
    mu = flat @ p["fc_mu_w"].T + p["fc_mu_b"]
    logvar = flat @ p["fc_logvar_w"].T + p["fc_logvar_b"]
    return mu, logvar


if __name__ == "__main__":
    key = jax.random.PRNGKey(0)
    k_x, k_p = jax.random.split(key)
    x = jax.random.normal(k_x, (2, 1, 28, 28), jnp.float32)
    params = init_params(k_p)
    packed = prepare_params(params)          # one-time weight/constant packing

    fwd = jax.jit(encoder_forward)
    mu, logvar = fwd(x, packed)
    jax.block_until_ready(mu)
    jax.block_until_ready(logvar)

    assert mu.shape == (2, LATENT_DIMS)
    assert logvar.shape == (2, LATENT_DIMS)

    # Numeric check vs. plain-JAX reference (f32 path; loose tol covers MXU
    # default-precision matmul passes).
    mu_ref, logvar_ref = encoder_reference(x, params)
    assert float(jnp.max(jnp.abs(mu - mu_ref))) < 5e-2
    assert float(jnp.max(jnp.abs(logvar - logvar_ref))) < 5e-2

    print("KERNEL_OK")
</pallas_src>

<mosaic_0001>
module attributes {stable_mosaic.version = 11 : i64} {
  func.func @encoder_fused_kernel(%arg0: i32, %arg1: memref<1x16x196xf32, #tpu.memory_space<vmem>>, %arg2: memref<8x16xf32, #tpu.memory_space<vmem>>, %arg3: memref<8x1xf32, #tpu.memory_space<vmem>>, %arg4: memref<16x196x49xf32, #tpu.memory_space<vmem>>, %arg5: memref<16x128xf32, #tpu.memory_space<vmem>>, %arg6: memref<16x1xf32, #tpu.memory_space<vmem>>, %arg7: memref<16x49x32xf32, #tpu.memory_space<vmem>>, %arg8: memref<1x32xf32, #tpu.memory_space<vmem>>, %arg9: memref<1x1x32xf32, #tpu.memory_space<vmem>>, %arg10: memref<128x49xf32, #tpu.memory_space<vmem>>) attributes {dimension_semantics = [#tpu.dimension_semantics<parallel>], iteration_bounds = array<i64: 2>, scalar_prefetch = 0 : i64, scratch_operands = 1 : i64, tpu.core_type = #tpu.core_type<tc>, window_params = [{transform_indices = @transform_0, window_bounds = array<i64: 1, 16, 196>}, {pipeline_mode = #tpu.pipeline_mode<synchronous>, transform_indices = @transform_1, window_bounds = array<i64: 8, 16>}, {pipeline_mode = #tpu.pipeline_mode<synchronous>, transform_indices = @transform_2, window_bounds = array<i64: 8, 1>}, {pipeline_mode = #tpu.pipeline_mode<synchronous>, transform_indices = @transform_3, window_bounds = array<i64: 16, 196, 49>}, {pipeline_mode = #tpu.pipeline_mode<synchronous>, transform_indices = @transform_4, window_bounds = array<i64: 16, 128>}, {pipeline_mode = #tpu.pipeline_mode<synchronous>, transform_indices = @transform_5, window_bounds = array<i64: 16, 1>}, {pipeline_mode = #tpu.pipeline_mode<synchronous>, transform_indices = @transform_6, window_bounds = array<i64: 16, 49, 32>}, {pipeline_mode = #tpu.pipeline_mode<synchronous>, transform_indices = @transform_7, window_bounds = array<i64: 1, 32>}, {transform_indices = @transform_8, window_bounds = array<i64: 1, 1, 32>}]} {
    %c0 = arith.constant 0 : index
    %c0_0 = arith.constant 0 : index
    %0 = vector.load %arg2[%c0, %c0_0] : memref<8x16xf32, #tpu.memory_space<vmem>>, vector<8x16xf32>
    %c0_1 = arith.constant 0 : index
    %c0_2 = arith.constant 0 : index
    %c0_3 = arith.constant 0 : index
    %1 = vector.load %arg1[%c0_1, %c0_2, %c0_3] : memref<1x16x196xf32, #tpu.memory_space<vmem>>, vector<1x16x196xf32>
    %2 = vector.shape_cast %1 : vector<1x16x196xf32> to vector<16x196xf32>
    %cst = arith.constant dense<0.000000e+00> : vector<8x196xf32>
    %3 = tpu.matmul %0, %2, %cst {dimension_numbers = #tpu.dot_dimension_numbers<[1], [0], [0], [1], [0, 0, 1, 1], [], []>} : vector<8x16xf32>, vector<16x196xf32>, vector<8x196xf32> -> vector<8x196xf32>
    %c0_4 = arith.constant 0 : index
    %c0_5 = arith.constant 0 : index
    %4 = vector.load %arg3[%c0_4, %c0_5] : memref<8x1xf32, #tpu.memory_space<vmem>>, vector<8x1xf32>
    %5 = vector.broadcast %4 : vector<8x1xf32> to vector<8x196xf32>
    %6 = arith.addf %3, %5 : vector<8x196xf32>
    %cst_6 = arith.constant 0.000000e+00 : f32
    %7 = vector.broadcast %cst_6 : f32 to vector<8x196xf32>
    %8 = arith.maximumf %6, %7 : vector<8x196xf32>
    %c0_7 = arith.constant 0 : index
    %c0_8 = arith.constant 0 : index
    %c0_9 = arith.constant 0 : index
    %9 = vector.load %arg4[%c0_7, %c0_8, %c0_9] : memref<16x196x49xf32, #tpu.memory_space<vmem>>, vector<1x196x49xf32>
    %10 = vector.shape_cast %9 : vector<1x196x49xf32> to vector<196x49xf32>
    %cst_10 = arith.constant dense<0.000000e+00> : vector<8x49xf32>
    %11 = tpu.matmul %8, %10, %cst_10 {dimension_numbers = #tpu.dot_dimension_numbers<[1], [0], [0], [1], [0, 0, 1, 1], [], []>} : vector<8x196xf32>, vector<196x49xf32>, vector<8x49xf32> -> vector<8x49xf32>
    %c0_11 = arith.constant 0 : index
    %c0_12 = arith.constant 0 : index
    %12 = vector.load %arg10[%c0_11, %c0_12] : memref<128x49xf32, #tpu.memory_space<vmem>>, vector<8x49xf32>
    tpu.vector_store %arg10[%c0_11, %c0_12], %11 {strides = array<i32>} : memref<128x49xf32, #tpu.memory_space<vmem>>, vector<8x49xf32>,
    %c1 = arith.constant 1 : index
    %c0_13 = arith.constant 0 : index
    %c0_14 = arith.constant 0 : index
    %13 = vector.load %arg4[%c1, %c0_13, %c0_14] : memref<16x196x49xf32, #tpu.memory_space<vmem>>, vector<1x196x49xf32>
    %14 = vector.shape_cast %13 : vector<1x196x49xf32> to vector<196x49xf32>
    %cst_15 = arith.constant dense<0.000000e+00> : vector<8x49xf32>
    %15 = tpu.matmul %8, %14, %cst_15 {dimension_numbers = #tpu.dot_dimension_numbers<[1], [0], [0], [1], [0, 0, 1, 1], [], []>} : vector<8x196xf32>, vector<196x49xf32>, vector<8x49xf32> -> vector<8x49xf32>
    %c8 = arith.constant 8 : index
    %c0_16 = arith.constant 0 : index
    %16 = vector.load %arg10[%c8, %c0_16] : memref<128x49xf32, #tpu.memory_space<vmem>>, vector<8x49xf32>
    tpu.vector_store %arg10[%c8, %c0_16], %15 {strides = array<i32>} : memref<128x49xf32, #tpu.memory_space<vmem>>, vector<8x49xf32>,
    %c2 = arith.constant 2 : index
    %c0_17 = arith.constant 0 : index
    %c0_18 = arith.constant 0 : index
    %17 = vector.load %arg4[%c2, %c0_17, %c0_18] : memref<16x196x49xf32, #tpu.memory_space<vmem>>, vector<1x196x49xf32>
    %18 = vector.shape_cast %17 : vector<1x196x49xf32> to vector<196x49xf32>
    %cst_19 = arith.constant dense<0.000000e+00> : vector<8x49xf32>
    %19 = tpu.matmul %8, %18, %cst_19 {dimension_numbers = #tpu.dot_dimension_numbers<[1], [0], [0], [1], [0, 0, 1, 1], [], []>} : vector<8x196xf32>, vector<196x49xf32>, vector<8x49xf32> -> vector<8x49xf32>
    %c16 = arith.constant 16 : index
    %c0_20 = arith.constant 0 : index
    %20 = vector.load %arg10[%c16, %c0_20] : memref<128x49xf32, #tpu.memory_space<vmem>>, vector<8x49xf32>
    tpu.vector_store %arg10[%c16, %c0_20], %19 {strides = array<i32>} : memref<128x49xf32, #tpu.memory_space<vmem>>, vector<8x49xf32>,
    %c3 = arith.constant 3 : index
    %c0_21 = arith.constant 0 : index
    %c0_22 = arith.constant 0 : index
    %21 = vector.load %arg4[%c3, %c0_21, %c0_22] : memref<16x196x49xf32, #tpu.memory_space<vmem>>, vector<1x196x49xf32>
    %22 = vector.shape_cast %21 : vector<1x196x49xf32> to vector<196x49xf32>
    %cst_23 = arith.constant dense<0.000000e+00> : vector<8x49xf32>
    %23 = tpu.matmul %8, %22, %cst_23 {dimension_numbers = #tpu.dot_dimension_numbers<[1], [0], [0], [1], [0, 0, 1, 1], [], []>} : vector<8x196xf32>, vector<196x49xf32>, vector<8x49xf32> -> vector<8x49xf32>
    %c24 = arith.constant 24 : index
    %c0_24 = arith.constant 0 : index
    %24 = vector.load %arg10[%c24, %c0_24] : memref<128x49xf32, #tpu.memory_space<vmem>>, vector<8x49xf32>
    tpu.vector_store %arg10[%c24, %c0_24], %23 {strides = array<i32>} : memref<128x49xf32, #tpu.memory_space<vmem>>, vector<8x49xf32>,
    %c4 = arith.constant 4 : index
    %c0_25 = arith.constant 0 : index
    %c0_26 = arith.constant 0 : index
    %25 = vector.load %arg4[%c4, %c0_25, %c0_26] : memref<16x196x49xf32, #tpu.memory_space<vmem>>, vector<1x196x49xf32>
    %26 = vector.shape_cast %25 : vector<1x196x49xf32> to vector<196x49xf32>
    %cst_27 = arith.constant dense<0.000000e+00> : vector<8x49xf32>
    %27 = tpu.matmul %8, %26, %cst_27 {dimension_numbers = #tpu.dot_dimension_numbers<[1], [0], [0], [1], [0, 0, 1, 1], [], []>} : vector<8x196xf32>, vector<196x49xf32>, vector<8x49xf32> -> vector<8x49xf32>
    %c32 = arith.constant 32 : index
    %c0_28 = arith.constant 0 : index
    %28 = vector.load %arg10[%c32, %c0_28] : memref<128x49xf32, #tpu.memory_space<vmem>>, vector<8x49xf32>
    tpu.vector_store %arg10[%c32, %c0_28], %27 {strides = array<i32>} : memref<128x49xf32, #tpu.memory_space<vmem>>, vector<8x49xf32>,
    %c5 = arith.constant 5 : index
    %c0_29 = arith.constant 0 : index
    %c0_30 = arith.constant 0 : index
    %29 = vector.load %arg4[%c5, %c0_29, %c0_30] : memref<16x196x49xf32, #tpu.memory_space<vmem>>, vector<1x196x49xf32>
    %30 = vector.shape_cast %29 : vector<1x196x49xf32> to vector<196x49xf32>
    %cst_31 = arith.constant dense<0.000000e+00> : vector<8x49xf32>
    %31 = tpu.matmul %8, %30, %cst_31 {dimension_numbers = #tpu.dot_dimension_numbers<[1], [0], [0], [1], [0, 0, 1, 1], [], []>} : vector<8x196xf32>, vector<196x49xf32>, vector<8x49xf32> -> vector<8x49xf32>
    %c40 = arith.constant 40 : index
    %c0_32 = arith.constant 0 : index
    %32 = vector.load %arg10[%c40, %c0_32] : memref<128x49xf32, #tpu.memory_space<vmem>>, vector<8x49xf32>
    tpu.vector_store %arg10[%c40, %c0_32], %31 {strides = array<i32>} : memref<128x49xf32, #tpu.memory_space<vmem>>, vector<8x49xf32>,
    %c6 = arith.constant 6 : index
    %c0_33 = arith.constant 0 : index
    %c0_34 = arith.constant 0 : index
    %33 = vector.load %arg4[%c6, %c0_33, %c0_34] : memref<16x196x49xf32, #tpu.memory_space<vmem>>, vector<1x196x49xf32>
    %34 = vector.shape_cast %33 : vector<1x196x49xf32> to vector<196x49xf32>
    %cst_35 = arith.constant dense<0.000000e+00> : vector<8x49xf32>
    %35 = tpu.matmul %8, %34, %cst_35 {dimension_numbers = #tpu.dot_dimension_numbers<[1], [0], [0], [1], [0, 0, 1, 1], [], []>} : vector<8x196xf32>, vector<196x49xf32>, vector<8x49xf32> -> vector<8x49xf32>
    %c48 = arith.constant 48 : index
    %c0_36 = arith.constant 0 : index
    %36 = vector.load %arg10[%c48, %c0_36] : memref<128x49xf32, #tpu.memory_space<vmem>>, vector<8x49xf32>
    tpu.vector_store %arg10[%c48, %c0_36], %35 {strides = array<i32>} : memref<128x49xf32, #tpu.memory_space<vmem>>, vector<8x49xf32>,
    %c7 = arith.constant 7 : index
    %c0_37 = arith.constant 0 : index
    %c0_38 = arith.constant 0 : index
    %37 = vector.load %arg4[%c7, %c0_37, %c0_38] : memref<16x196x49xf32, #tpu.memory_space<vmem>>, vector<1x196x49xf32>
    %38 = vector.shape_cast %37 : vector<1x196x49xf32> to vector<196x49xf32>
    %cst_39 = arith.constant dense<0.000000e+00> : vector<8x49xf32>
    %39 = tpu.matmul %8, %38, %cst_39 {dimension_numbers = #tpu.dot_dimension_numbers<[1], [0], [0], [1], [0, 0, 1, 1], [], []>} : vector<8x196xf32>, vector<196x49xf32>, vector<8x49xf32> -> vector<8x49xf32>
    %c56 = arith.constant 56 : index
    %c0_40 = arith.constant 0 : index
    %40 = vector.load %arg10[%c56, %c0_40] : memref<128x49xf32, #tpu.memory_space<vmem>>, vector<8x49xf32>
    tpu.vector_store %arg10[%c56, %c0_40], %39 {strides = array<i32>} : memref<128x49xf32, #tpu.memory_space<vmem>>, vector<8x49xf32>,
    %c8_41 = arith.constant 8 : index
    %c0_42 = arith.constant 0 : index
    %c0_43 = arith.constant 0 : index
    %41 = vector.load %arg4[%c8_41, %c0_42, %c0_43] : memref<16x196x49xf32, #tpu.memory_space<vmem>>, vector<1x196x49xf32>
    %42 = vector.shape_cast %41 : vector<1x196x49xf32> to vector<196x49xf32>
    %cst_44 = arith.constant dense<0.000000e+00> : vector<8x49xf32>
    %43 = tpu.matmul %8, %42, %cst_44 {dimension_numbers = #tpu.dot_dimension_numbers<[1], [0], [0], [1], [0, 0, 1, 1], [], []>} : vector<8x196xf32>, vector<196x49xf32>, vector<8x49xf32> -> vector<8x49xf32>
    %c64 = arith.constant 64 : index
    %c0_45 = arith.constant 0 : index
    %44 = vector.load %arg10[%c64, %c0_45] : memref<128x49xf32, #tpu.memory_space<vmem>>, vector<8x49xf32>
    tpu.vector_store %arg10[%c64, %c0_45], %43 {strides = array<i32>} : memref<128x49xf32, #tpu.memory_space<vmem>>, vector<8x49xf32>,
    %c9 = arith.constant 9 : index
    %c0_46 = arith.constant 0 : index
    %c0_47 = arith.constant 0 : index
    %45 = vector.load %arg4[%c9, %c0_46, %c0_47] : memref<16x196x49xf32, #tpu.memory_space<vmem>>, vector<1x196x49xf32>
    %46 = vector.shape_cast %45 : vector<1x196x49xf32> to vector<196x49xf32>
    %cst_48 = arith.constant dense<0.000000e+00> : vector<8x49xf32>
    %47 = tpu.matmul %8, %46, %cst_48 {dimension_numbers = #tpu.dot_dimension_numbers<[1], [0], [0], [1], [0, 0, 1, 1], [], []>} : vector<8x196xf32>, vector<196x49xf32>, vector<8x49xf32> -> vector<8x49xf32>
    %c72 = arith.constant 72 : index
    %c0_49 = arith.constant 0 : index
    %48 = vector.load %arg10[%c72, %c0_49] : memref<128x49xf32, #tpu.memory_space<vmem>>, vector<8x49xf32>
    tpu.vector_store %arg10[%c72, %c0_49], %47 {strides = array<i32>} : memref<128x49xf32, #tpu.memory_space<vmem>>, vector<8x49xf32>,
    %c10 = arith.constant 10 : index
    %c0_50 = arith.constant 0 : index
    %c0_51 = arith.constant 0 : index
    %49 = vector.load %arg4[%c10, %c0_50, %c0_51] : memref<16x196x49xf32, #tpu.memory_space<vmem>>, vector<1x196x49xf32>
    %50 = vector.shape_cast %49 : vector<1x196x49xf32> to vector<196x49xf32>
    %cst_52 = arith.constant dense<0.000000e+00> : vector<8x49xf32>
    %51 = tpu.matmul %8, %50, %cst_52 {dimension_numbers = #tpu.dot_dimension_numbers<[1], [0], [0], [1], [0, 0, 1, 1], [], []>} : vector<8x196xf32>, vector<196x49xf32>, vector<8x49xf32> -> vector<8x49xf32>
    %c80 = arith.constant 80 : index
    %c0_53 = arith.constant 0 : index
    %52 = vector.load %arg10[%c80, %c0_53] : memref<128x49xf32, #tpu.memory_space<vmem>>, vector<8x49xf32>
    tpu.vector_store %arg10[%c80, %c0_53], %51 {strides = array<i32>} : memref<128x49xf32, #tpu.memory_space<vmem>>, vector<8x49xf32>,
    %c11 = arith.constant 11 : index
    %c0_54 = arith.constant 0 : index
    %c0_55 = arith.constant 0 : index
    %53 = vector.load %arg4[%c11, %c0_54, %c0_55] : memref<16x196x49xf32, #tpu.memory_space<vmem>>, vector<1x196x49xf32>
    %54 = vector.shape_cast %53 : vector<1x196x49xf32> to vector<196x49xf32>
    %cst_56 = arith.constant dense<0.000000e+00> : vector<8x49xf32>
    %55 = tpu.matmul %8, %54, %cst_56 {dimension_numbers = #tpu.dot_dimension_numbers<[1], [0], [0], [1], [0, 0, 1, 1], [], []>} : vector<8x196xf32>, vector<196x49xf32>, vector<8x49xf32> -> vector<8x49xf32>
    %c88 = arith.constant 88 : index
    %c0_57 = arith.constant 0 : index
    %56 = vector.load %arg10[%c88, %c0_57] : memref<128x49xf32, #tpu.memory_space<vmem>>, vector<8x49xf32>
    tpu.vector_store %arg10[%c88, %c0_57], %55 {strides = array<i32>} : memref<128x49xf32, #tpu.memory_space<vmem>>, vector<8x49xf32>,
    %c12 = arith.constant 12 : index
    %c0_58 = arith.constant 0 : index
    %c0_59 = arith.constant 0 : index
    %57 = vector.load %arg4[%c12, %c0_58, %c0_59] : memref<16x196x49xf32, #tpu.memory_space<vmem>>, vector<1x196x49xf32>
    %58 = vector.shape_cast %57 : vector<1x196x49xf32> to vector<196x49xf32>
    %cst_60 = arith.constant dense<0.000000e+00> : vector<8x49xf32>
    %59 = tpu.matmul %8, %58, %cst_60 {dimension_numbers = #tpu.dot_dimension_numbers<[1], [0], [0], [1], [0, 0, 1, 1], [], []>} : vector<8x196xf32>, vector<196x49xf32>, vector<8x49xf32> -> vector<8x49xf32>
    %c96 = arith.constant 96 : index
    %c0_61 = arith.constant 0 : index
    %60 = vector.load %arg10[%c96, %c0_61] : memref<128x49xf32, #tpu.memory_space<vmem>>, vector<8x49xf32>
    tpu.vector_store %arg10[%c96, %c0_61], %59 {strides = array<i32>} : memref<128x49xf32, #tpu.memory_space<vmem>>, vector<8x49xf32>,
    %c13 = arith.constant 13 : index
    %c0_62 = arith.constant 0 : index
    %c0_63 = arith.constant 0 : index
    %61 = vector.load %arg4[%c13, %c0_62, %c0_63] : memref<16x196x49xf32, #tpu.memory_space<vmem>>, vector<1x196x49xf32>
    %62 = vector.shape_cast %61 : vector<1x196x49xf32> to vector<196x49xf32>
    %cst_64 = arith.constant dense<0.000000e+00> : vector<8x49xf32>
    %63 = tpu.matmul %8, %62, %cst_64 {dimension_numbers = #tpu.dot_dimension_numbers<[1], [0], [0], [1], [0, 0, 1, 1], [], []>} : vector<8x196xf32>, vector<196x49xf32>, vector<8x49xf32> -> vector<8x49xf32>
    %c104 = arith.constant 104 : index
    %c0_65 = arith.constant 0 : index
    %64 = vector.load %arg10[%c104, %c0_65] : memref<128x49xf32, #tpu.memory_space<vmem>>, vector<8x49xf32>
    tpu.vector_store %arg10[%c104, %c0_65], %63 {strides = array<i32>} : memref<128x49xf32, #tpu.memory_space<vmem>>, vector<8x49xf32>,
    %c14 = arith.constant 14 : index
    %c0_66 = arith.constant 0 : index
    %c0_67 = arith.constant 0 : index
    %65 = vector.load %arg4[%c14, %c0_66, %c0_67] : memref<16x196x49xf32, #tpu.memory_space<vmem>>, vector<1x196x49xf32>
    %66 = vector.shape_cast %65 : vector<1x196x49xf32> to vector<196x49xf32>
    %cst_68 = arith.constant dense<0.000000e+00> : vector<8x49xf32>
    %67 = tpu.matmul %8, %66, %cst_68 {dimension_numbers = #tpu.dot_dimension_numbers<[1], [0], [0], [1], [0, 0, 1, 1], [], []>} : vector<8x196xf32>, vector<196x49xf32>, vector<8x49xf32> -> vector<8x49xf32>
    %c112 = arith.constant 112 : index
    %c0_69 = arith.constant 0 : index
    %68 = vector.load %arg10[%c112, %c0_69] : memref<128x49xf32, #tpu.memory_space<vmem>>, vector<8x49xf32>
    tpu.vector_store %arg10[%c112, %c0_69], %67 {strides = array<i32>} : memref<128x49xf32, #tpu.memory_space<vmem>>, vector<8x49xf32>,
    %c15 = arith.constant 15 : index
    %c0_70 = arith.constant 0 : index
    %c0_71 = arith.constant 0 : index
    %69 = vector.load %arg4[%c15, %c0_70, %c0_71] : memref<16x196x49xf32, #tpu.memory_space<vmem>>, vector<1x196x49xf32>
    %70 = vector.shape_cast %69 : vector<1x196x49xf32> to vector<196x49xf32>
    %cst_72 = arith.constant dense<0.000000e+00> : vector<8x49xf32>
    %71 = tpu.matmul %8, %70, %cst_72 {dimension_numbers = #tpu.dot_dimension_numbers<[1], [0], [0], [1], [0, 0, 1, 1], [], []>} : vector<8x196xf32>, vector<196x49xf32>, vector<8x49xf32> -> vector<8x49xf32>
    %c120 = arith.constant 120 : index
    %c0_73 = arith.constant 0 : index
    %72 = vector.load %arg10[%c120, %c0_73] : memref<128x49xf32, #tpu.memory_space<vmem>>, vector<8x49xf32>
    tpu.vector_store %arg10[%c120, %c0_73], %71 {strides = array<i32>} : memref<128x49xf32, #tpu.memory_space<vmem>>, vector<8x49xf32>,
    %c0_74 = arith.constant 0 : index
    %c0_75 = arith.constant 0 : index
    %73 = vector.load %arg5[%c0_74, %c0_75] : memref<16x128xf32, #tpu.memory_space<vmem>>, vector<16x128xf32>
    %c0_76 = arith.constant 0 : index
    %c0_77 = arith.constant 0 : index
    %74 = vector.load %arg10[%c0_76, %c0_77] : memref<128x49xf32, #tpu.memory_space<vmem>>, vector<128x49xf32>
    %cst_78 = arith.constant dense<0.000000e+00> : vector<16x49xf32>
    %75 = tpu.matmul %73, %74, %cst_78 {dimension_numbers = #tpu.dot_dimension_numbers<[1], [0], [0], [1], [0, 0, 1, 1], [], []>} : vector<16x128xf32>, vector<128x49xf32>, vector<16x49xf32> -> vector<16x49xf32>
    %c0_79 = arith.constant 0 : index
    %c0_80 = arith.constant 0 : index
    %76 = vector.load %arg6[%c0_79, %c0_80] : memref<16x1xf32, #tpu.memory_space<vmem>>, vector<16x1xf32>
    %77 = vector.broadcast %76 : vector<16x1xf32> to vector<16x49xf32>
    %78 = arith.addf %75, %77 : vector<16x49xf32>
    %cst_81 = arith.constant 0.000000e+00 : f32
    %79 = vector.broadcast %cst_81 : f32 to vector<16x49xf32>
    %80 = arith.maximumf %78, %79 : vector<16x49xf32>
    %c0_82 = arith.constant 0 : index
    %c0_83 = arith.constant 0 : index
    %81 = vector.load %arg8[%c0_82, %c0_83] : memref<1x32xf32, #tpu.memory_space<vmem>>, vector<1x32xf32>
    %82 = vector.extract_strided_slice %80 {offsets = [0, 0], sizes = [1, 49], strides = [1, 1]} : vector<16x49xf32> to vector<1x49xf32>
    %c0_84 = arith.constant 0 : index
    %c0_85 = arith.constant 0 : index
    %c0_86 = arith.constant 0 : index
    %83 = vector.load %arg7[%c0_84, %c0_85, %c0_86] : memref<16x49x32xf32, #tpu.memory_space<vmem>>, vector<1x49x32xf32>
    %84 = vector.shape_cast %83 : vector<1x49x32xf32> to vector<49x32xf32>
    %cst_87 = arith.constant dense<0.000000e+00> : vector<1x32xf32>
    %85 = tpu.matmul %82, %84, %cst_87 {dimension_numbers = #tpu.dot_dimension_numbers<[1], [0], [0], [1], [0, 0, 1, 1], [], []>} : vector<1x49xf32>, vector<49x32xf32>, vector<1x32xf32> -> vector<1x32xf32>
    %86 = arith.addf %81, %85 : vector<1x32xf32>
    %87 = vector.extract_strided_slice %80 {offsets = [1, 0], sizes = [1, 49], strides = [1, 1]} : vector<16x49xf32> to vector<1x49xf32>
    %c1_88 = arith.constant 1 : index
    %c0_89 = arith.constant 0 : index
    %c0_90 = arith.constant 0 : index
    %88 = vector.load %arg7[%c1_88, %c0_89, %c0_90] : memref<16x49x32xf32, #tpu.memory_space<vmem>>, vector<1x49x32xf32>
    %89 = vector.shape_cast %88 : vector<1x49x32xf32> to vector<49x32xf32>
    %cst_91 = arith.constant dense<0.000000e+00> : vector<1x32xf32>
    %90 = tpu.matmul %87, %89, %cst_91 {dimension_numbers = #tpu.dot_dimension_numbers<[1], [0], [0], [1], [0, 0, 1, 1], [], []>} : vector<1x49xf32>, vector<49x32xf32>, vector<1x32xf32> -> vector<1x32xf32>
    %91 = arith.addf %86, %90 : vector<1x32xf32>
    %92 = vector.extract_strided_slice %80 {offsets = [2, 0], sizes = [1, 49], strides = [1, 1]} : vector<16x49xf32> to vector<1x49xf32>
    %c2_92 = arith.constant 2 : index
    %c0_93 = arith.constant 0 : index
    %c0_94 = arith.constant 0 : index
    %93 = vector.load %arg7[%c2_92, %c0_93, %c0_94] : memref<16x49x32xf32, #tpu.memory_space<vmem>>, vector<1x49x32xf32>
    %94 = vector.shape_cast %93 : vector<1x49x32xf32> to vector<49x32xf32>
    %cst_95 = arith.constant dense<0.000000e+00> : vector<1x32xf32>
    %95 = tpu.matmul %92, %94, %cst_95 {dimension_numbers = #tpu.dot_dimension_numbers<[1], [0], [0], [1], [0, 0, 1, 1], [], []>} : vector<1x49xf32>, vector<49x32xf32>, vector<1x32xf32> -> vector<1x32xf32>
    %96 = arith.addf %91, %95 : vector<1x32xf32>
    %97 = vector.extract_strided_slice %80 {offsets = [3, 0], sizes = [1, 49], strides = [1, 1]} : vector<16x49xf32> to vector<1x49xf32>
    %c3_96 = arith.constant 3 : index
    %c0_97 = arith.constant 0 : index
    %c0_98 = arith.constant 0 : index
    %98 = vector.load %arg7[%c3_96, %c0_97, %c0_98] : memref<16x49x32xf32, #tpu.memory_space<vmem>>, vector<1x49x32xf32>
    %99 = vector.shape_cast %98 : vector<1x49x32xf32> to vector<49x32xf32>
    %cst_99 = arith.constant dense<0.000000e+00> : vector<1x32xf32>
    %100 = tpu.matmul %97, %99, %cst_99 {dimension_numbers = #tpu.dot_dimension_numbers<[1], [0], [0], [1], [0, 0, 1, 1], [], []>} : vector<1x49xf32>, vector<49x32xf32>, vector<1x32xf32> -> vector<1x32xf32>
    %101 = arith.addf %96, %100 : vector<1x32xf32>
    %102 = vector.extract_strided_slice %80 {offsets = [4, 0], sizes = [1, 49], strides = [1, 1]} : vector<16x49xf32> to vector<1x49xf32>
    %c4_100 = arith.constant 4 : index
    %c0_101 = arith.constant 0 : index
    %c0_102 = arith.constant 0 : index
    %103 = vector.load %arg7[%c4_100, %c0_101, %c0_102] : memref<16x49x32xf32, #tpu.memory_space<vmem>>, vector<1x49x32xf32>
    %104 = vector.shape_cast %103 : vector<1x49x32xf32> to vector<49x32xf32>
    %cst_103 = arith.constant dense<0.000000e+00> : vector<1x32xf32>
    %105 = tpu.matmul %102, %104, %cst_103 {dimension_numbers = #tpu.dot_dimension_numbers<[1], [0], [0], [1], [0, 0, 1, 1], [], []>} : vector<1x49xf32>, vector<49x32xf32>, vector<1x32xf32> -> vector<1x32xf32>
    %106 = arith.addf %101, %105 : vector<1x32xf32>
    %107 = vector.extract_strided_slice %80 {offsets = [5, 0], sizes = [1, 49], strides = [1, 1]} : vector<16x49xf32> to vector<1x49xf32>
    %c5_104 = arith.constant 5 : index
    %c0_105 = arith.constant 0 : index
    %c0_106 = arith.constant 0 : index
    %108 = vector.load %arg7[%c5_104, %c0_105, %c0_106] : memref<16x49x32xf32, #tpu.memory_space<vmem>>, vector<1x49x32xf32>
    %109 = vector.shape_cast %108 : vector<1x49x32xf32> to vector<49x32xf32>
    %cst_107 = arith.constant dense<0.000000e+00> : vector<1x32xf32>
    %110 = tpu.matmul %107, %109, %cst_107 {dimension_numbers = #tpu.dot_dimension_numbers<[1], [0], [0], [1], [0, 0, 1, 1], [], []>} : vector<1x49xf32>, vector<49x32xf32>, vector<1x32xf32> -> vector<1x32xf32>
    %111 = arith.addf %106, %110 : vector<1x32xf32>
    %112 = vector.extract_strided_slice %80 {offsets = [6, 0], sizes = [1, 49], strides = [1, 1]} : vector<16x49xf32> to vector<1x49xf32>
    %c6_108 = arith.constant 6 : index
    %c0_109 = arith.constant 0 : index
    %c0_110 = arith.constant 0 : index
    %113 = vector.load %arg7[%c6_108, %c0_109, %c0_110] : memref<16x49x32xf32, #tpu.memory_space<vmem>>, vector<1x49x32xf32>
    %114 = vector.shape_cast %113 : vector<1x49x32xf32> to vector<49x32xf32>
    %cst_111 = arith.constant dense<0.000000e+00> : vector<1x32xf32>
    %115 = tpu.matmul %112, %114, %cst_111 {dimension_numbers = #tpu.dot_dimension_numbers<[1], [0], [0], [1], [0, 0, 1, 1], [], []>} : vector<1x49xf32>, vector<49x32xf32>, vector<1x32xf32> -> vector<1x32xf32>
    %116 = arith.addf %111, %115 : vector<1x32xf32>
    %117 = vector.extract_strided_slice %80 {offsets = [7, 0], sizes = [1, 49], strides = [1, 1]} : vector<16x49xf32> to vector<1x49xf32>
    %c7_112 = arith.constant 7 : index
    %c0_113 = arith.constant 0 : index
    %c0_114 = arith.constant 0 : index
    %118 = vector.load %arg7[%c7_112, %c0_113, %c0_114] : memref<16x49x32xf32, #tpu.memory_space<vmem>>, vector<1x49x32xf32>
    %119 = vector.shape_cast %118 : vector<1x49x32xf32> to vector<49x32xf32>
    %cst_115 = arith.constant dense<0.000000e+00> : vector<1x32xf32>
    %120 = tpu.matmul %117, %119, %cst_115 {dimension_numbers = #tpu.dot_dimension_numbers<[1], [0], [0], [1], [0, 0, 1, 1], [], []>} : vector<1x49xf32>, vector<49x32xf32>, vector<1x32xf32> -> vector<1x32xf32>
    %121 = arith.addf %116, %120 : vector<1x32xf32>
    %122 = vector.extract_strided_slice %80 {offsets = [8, 0], sizes = [1, 49], strides = [1, 1]} : vector<16x49xf32> to vector<1x49xf32>
    %c8_116 = arith.constant 8 : index
    %c0_117 = arith.constant 0 : index
    %c0_118 = arith.constant 0 : index
    %123 = vector.load %arg7[%c8_116, %c0_117, %c0_118] : memref<16x49x32xf32, #tpu.memory_space<vmem>>, vector<1x49x32xf32>
    %124 = vector.shape_cast %123 : vector<1x49x32xf32> to vector<49x32xf32>
    %cst_119 = arith.constant dense<0.000000e+00> : vector<1x32xf32>
    %125 = tpu.matmul %122, %124, %cst_119 {dimension_numbers = #tpu.dot_dimension_numbers<[1], [0], [0], [1], [0, 0, 1, 1], [], []>} : vector<1x49xf32>, vector<49x32xf32>, vector<1x32xf32> -> vector<1x32xf32>
    %126 = arith.addf %121, %125 : vector<1x32xf32>
    %127 = vector.extract_strided_slice %80 {offsets = [9, 0], sizes = [1, 49], strides = [1, 1]} : vector<16x49xf32> to vector<1x49xf32>
    %c9_120 = arith.constant 9 : index
    %c0_121 = arith.constant 0 : index
    %c0_122 = arith.constant 0 : index
    %128 = vector.load %arg7[%c9_120, %c0_121, %c0_122] : memref<16x49x32xf32, #tpu.memory_space<vmem>>, vector<1x49x32xf32>
    %129 = vector.shape_cast %128 : vector<1x49x32xf32> to vector<49x32xf32>
    %cst_123 = arith.constant dense<0.000000e+00> : vector<1x32xf32>
    %130 = tpu.matmul %127, %129, %cst_123 {dimension_numbers = #tpu.dot_dimension_numbers<[1], [0], [0], [1], [0, 0, 1, 1], [], []>} : vector<1x49xf32>, vector<49x32xf32>, vector<1x32xf32> -> vector<1x32xf32>
    %131 = arith.addf %126, %130 : vector<1x32xf32>
    %132 = vector.extract_strided_slice %80 {offsets = [10, 0], sizes = [1, 49], strides = [1, 1]} : vector<16x49xf32> to vector<1x49xf32>
    %c10_124 = arith.constant 10 : index
    %c0_125 = arith.constant 0 : index
    %c0_126 = arith.constant 0 : index
    %133 = vector.load %arg7[%c10_124, %c0_125, %c0_126] : memref<16x49x32xf32, #tpu.memory_space<vmem>>, vector<1x49x32xf32>
    %134 = vector.shape_cast %133 : vector<1x49x32xf32> to vector<49x32xf32>
    %cst_127 = arith.constant dense<0.000000e+00> : vector<1x32xf32>
    %135 = tpu.matmul %132, %134, %cst_127 {dimension_numbers = #tpu.dot_dimension_numbers<[1], [0], [0], [1], [0, 0, 1, 1], [], []>} : vector<1x49xf32>, vector<49x32xf32>, vector<1x32xf32> -> vector<1x32xf32>
    %136 = arith.addf %131, %135 : vector<1x32xf32>
    %137 = vector.extract_strided_slice %80 {offsets = [11, 0], sizes = [1, 49], strides = [1, 1]} : vector<16x49xf32> to vector<1x49xf32>
    %c11_128 = arith.constant 11 : index
    %c0_129 = arith.constant 0 : index
    %c0_130 = arith.constant 0 : index
    %138 = vector.load %arg7[%c11_128, %c0_129, %c0_130] : memref<16x49x32xf32, #tpu.memory_space<vmem>>, vector<1x49x32xf32>
    %139 = vector.shape_cast %138 : vector<1x49x32xf32> to vector<49x32xf32>
    %cst_131 = arith.constant dense<0.000000e+00> : vector<1x32xf32>
    %140 = tpu.matmul %137, %139, %cst_131 {dimension_numbers = #tpu.dot_dimension_numbers<[1], [0], [0], [1], [0, 0, 1, 1], [], []>} : vector<1x49xf32>, vector<49x32xf32>, vector<1x32xf32> -> vector<1x32xf32>
    %141 = arith.addf %136, %140 : vector<1x32xf32>
    %142 = vector.extract_strided_slice %80 {offsets = [12, 0], sizes = [1, 49], strides = [1, 1]} : vector<16x49xf32> to vector<1x49xf32>
    %c12_132 = arith.constant 12 : index
    %c0_133 = arith.constant 0 : index
    %c0_134 = arith.constant 0 : index
    %143 = vector.load %arg7[%c12_132, %c0_133, %c0_134] : memref<16x49x32xf32, #tpu.memory_space<vmem>>, vector<1x49x32xf32>
    %144 = vector.shape_cast %143 : vector<1x49x32xf32> to vector<49x32xf32>
    %cst_135 = arith.constant dense<0.000000e+00> : vector<1x32xf32>
    %145 = tpu.matmul %142, %144, %cst_135 {dimension_numbers = #tpu.dot_dimension_numbers<[1], [0], [0], [1], [0, 0, 1, 1], [], []>} : vector<1x49xf32>, vector<49x32xf32>, vector<1x32xf32> -> vector<1x32xf32>
    %146 = arith.addf %141, %145 : vector<1x32xf32>
    %147 = vector.extract_strided_slice %80 {offsets = [13, 0], sizes = [1, 49], strides = [1, 1]} : vector<16x49xf32> to vector<1x49xf32>
    %c13_136 = arith.constant 13 : index
    %c0_137 = arith.constant 0 : index
    %c0_138 = arith.constant 0 : index
    %148 = vector.load %arg7[%c13_136, %c0_137, %c0_138] : memref<16x49x32xf32, #tpu.memory_space<vmem>>, vector<1x49x32xf32>
    %149 = vector.shape_cast %148 : vector<1x49x32xf32> to vector<49x32xf32>
    %cst_139 = arith.constant dense<0.000000e+00> : vector<1x32xf32>
    %150 = tpu.matmul %147, %149, %cst_139 {dimension_numbers = #tpu.dot_dimension_numbers<[1], [0], [0], [1], [0, 0, 1, 1], [], []>} : vector<1x49xf32>, vector<49x32xf32>, vector<1x32xf32> -> vector<1x32xf32>
    %151 = arith.addf %146, %150 : vector<1x32xf32>
    %152 = vector.extract_strided_slice %80 {offsets = [14, 0], sizes = [1, 49], strides = [1, 1]} : vector<16x49xf32> to vector<1x49xf32>
    %c14_140 = arith.constant 14 : index
    %c0_141 = arith.constant 0 : index
    %c0_142 = arith.constant 0 : index
    %153 = vector.load %arg7[%c14_140, %c0_141, %c0_142] : memref<16x49x32xf32, #tpu.memory_space<vmem>>, vector<1x49x32xf32>
    %154 = vector.shape_cast %153 : vector<1x49x32xf32> to vector<49x32xf32>
    %cst_143 = arith.constant dense<0.000000e+00> : vector<1x32xf32>
    %155 = tpu.matmul %152, %154, %cst_143 {dimension_numbers = #tpu.dot_dimension_numbers<[1], [0], [0], [1], [0, 0, 1, 1], [], []>} : vector<1x49xf32>, vector<49x32xf32>, vector<1x32xf32> -> vector<1x32xf32>
    %156 = arith.addf %151, %155 : vector<1x32xf32>
    %157 = vector.extract_strided_slice %80 {offsets = [15, 0], sizes = [1, 49], strides = [1, 1]} : vector<16x49xf32> to vector<1x49xf32>
    %c15_144 = arith.constant 15 : index
    %c0_145 = arith.constant 0 : index
    %c0_146 = arith.constant 0 : index
    %158 = vector.load %arg7[%c15_144, %c0_145, %c0_146] : memref<16x49x32xf32, #tpu.memory_space<vmem>>, vector<1x49x32xf32>
    %159 = vector.shape_cast %158 : vector<1x49x32xf32> to vector<49x32xf32>
    %cst_147 = arith.constant dense<0.000000e+00> : vector<1x32xf32>
    %160 = tpu.matmul %157, %159, %cst_147 {dimension_numbers = #tpu.dot_dimension_numbers<[1], [0], [0], [1], [0, 0, 1, 1], [], []>} : vector<1x49xf32>, vector<49x32xf32>, vector<1x32xf32> -> vector<1x32xf32>
    %161 = arith.addf %156, %160 : vector<1x32xf32>
    %c0_148 = arith.constant 0 : index
    %c0_149 = arith.constant 0 : index
    %c0_150 = arith.constant 0 : index
    %162 = vector.load %arg9[%c0_148, %c0_149, %c0_150] : memref<1x1x32xf32, #tpu.memory_space<vmem>>, vector<1x1x32xf32>
    %163 = vector.shape_cast %162 : vector<1x1x32xf32> to vector<1x32xf32>
    %164 = vector.shape_cast %161 : vector<1x32xf32> to vector<1x1x32xf32>
    tpu.vector_store %arg9[%c0_148, %c0_149, %c0_150], %164 {strides = array<i32>} : memref<1x1x32xf32, #tpu.memory_space<vmem>>, vector<1x1x32xf32>,
    return
  }
  func.func @transform_0(%arg0: i32) -> (i32, i32, i32) {
    %c0_i32 = arith.constant 0 : i32
    %c0_i32_0 = arith.constant 0 : i32
    %c0_i32_1 = arith.constant 0 : i32
    return %arg0, %c0_i32, %c0_i32_0 : i32, i32, i32
  }
  func.func @transform_1(%arg0: i32) -> (i32, i32) {
    %c0_i32 = arith.constant 0 : i32
    %c0_i32_0 = arith.constant 0 : i32
    %c0_i32_1 = arith.constant 0 : i32
    return %c0_i32, %c0_i32_0 : i32, i32
  }
  func.func @transform_2(%arg0: i32) -> (i32, i32) {
    %c0_i32 = arith.constant 0 : i32
    %c0_i32_0 = arith.constant 0 : i32
    %c0_i32_1 = arith.constant 0 : i32
    return %c0_i32, %c0_i32_0 : i32, i32
  }
  func.func @transform_3(%arg0: i32) -> (i32, i32, i32) {
    %c0_i32 = arith.constant 0 : i32
    %c0_i32_0 = arith.constant 0 : i32
    %c0_i32_1 = arith.constant 0 : i32
    %c0_i32_2 = arith.constant 0 : i32
    return %c0_i32, %c0_i32_0, %c0_i32_1 : i32, i32, i32
  }
  func.func @transform_4(%arg0: i32) -> (i32, i32) {
    %c0_i32 = arith.constant 0 : i32
    %c0_i32_0 = arith.constant 0 : i32
    %c0_i32_1 = arith.constant 0 : i32
    return %c0_i32, %c0_i32_0 : i32, i32
  }
  func.func @transform_5(%arg0: i32) -> (i32, i32) {
    %c0_i32 = arith.constant 0 : i32
    %c0_i32_0 = arith.constant 0 : i32
    %c0_i32_1 = arith.constant 0 : i32
    return %c0_i32, %c0_i32_0 : i32, i32
  }
  func.func @transform_6(%arg0: i32) -> (i32, i32, i32) {
    %c0_i32 = arith.constant 0 : i32
    %c0_i32_0 = arith.constant 0 : i32
    %c0_i32_1 = arith.constant 0 : i32
    %c0_i32_2 = arith.constant 0 : i32
    return %c0_i32, %c0_i32_0, %c0_i32_1 : i32, i32, i32
  }
  func.func @transform_7(%arg0: i32) -> (i32, i32) {
    %c0_i32 = arith.constant 0 : i32
    %c0_i32_0 = arith.constant 0 : i32
    %c0_i32_1 = arith.constant 0 : i32
    return %c0_i32, %c0_i32_0 : i32, i32
  }
  func.func @transform_8(%arg0: i32) -> (i32, i32, i32) {
    %c0_i32 = arith.constant 0 : i32
    %c0_i32_0 = arith.constant 0 : i32
    %c0_i32_1 = arith.constant 0 : i32
    return %arg0, %c0_i32, %c0_i32_0 : i32, i32, i32
  }
}

</mosaic_0001>

<llo_original>
// kernel: encoder_forward.1
$region0: #{encoder_forward.1}
  #allocation0 [shape = 'u32[]', space=smem, size = 0x4, offset = 0x4, fixed_abs, tag = 'smem constant byte address 0x4 - core index']
  #allocation1 [shape = 'u32[72,128]{1,0:T(1,128)}', space=vmem, size = 0x9000, scoped, tag = 'internal scratch']
  #allocation2 [shape = 'f32[128,49]{1,0:T(8,128)}', space=vmem, size = 0x10000, scoped, tag = 'scratch operand']
  %s0 = inlined_call_operand.vmem [shape: f32[2,16,196], index: 0, kind: input, shape index: {}]
  %s1 = inlined_call_operand.vmem [shape: f32[8,16], index: 1, kind: input, shape index: {}]
  %s2 = inlined_call_operand.vmem [shape: f32[8,1], index: 2, kind: input, shape index: {}]
  %s3 = inlined_call_operand.vmem [shape: f32[16,196,49], index: 3, kind: input, shape index: {}]
  %s4 = inlined_call_operand.vmem [shape: f32[16,128], index: 4, kind: input, shape index: {}]
  %s5 = inlined_call_operand.vmem [shape: f32[16,1], index: 5, kind: input, shape index: {}]
  %s6 = inlined_call_operand.vmem [shape: f32[16,49,32], index: 6, kind: input, shape index: {}]
  %s7 = inlined_call_operand.vmem [shape: f32[1,32], index: 7, kind: input, shape index: {}]
  %s8 = inlined_call_operand.vmem [shape: f32[2,1,32], index: 8, kind: output, shape index: {}]
  %s9 = sld [smem:[#allocation0]]
  $region65: #{encoder_forward.1} parent=0
    _
  %s11 = ssub.s32 1, %s9
  %s12 = scalar_select 0, %s11, %s9
  loop: start=0, step=1, limit=4
  $region2: #{encoder_forward.1} parent=0 // loop_pre_header
    _
  $region3: #{encoder_forward.1} parent=0 // loop_header
    %s14 = sphi 0, %s18
    %p15 = scmp.ge.s32.totalorder %s14, 4
    %s24 = sphi 0, %s26
    %s27 = sphi 0, %s24
    %s28 = sphi 0, %s27
    %s44 = sphi 0, %s28
    %s48 = sphi 0, %s48
    %s50 = sphi 0, %s48
    %s51 = sphi 0, %s50
    %s65 = sphi 0, %s51
    %s69 = sphi 0, %s69
    %s71 = sphi 0, %s69
    %s72 = sphi 0, %s71
    %s86 = sphi 0, %s72
    %s90 = sphi 0, %s90
    %s92 = sphi 0, %s90
    %s93 = sphi 0, %s92
    %s107 = sphi 0, %s93
    %s111 = sphi 0, %s111
    %s113 = sphi 0, %s111
    %s114 = sphi 0, %s113
    %s128 = sphi 0, %s114
    %s132 = sphi 0, %s132
    %s134 = sphi 0, %s132
    %s135 = sphi 0, %s134
    %s149 = sphi 0, %s135
    %s153 = sphi 0, %s153
    %s155 = sphi 0, %s153
    %s156 = sphi 0, %s155
    %s170 = sphi 0, %s156
    %s174 = sphi 0, %s174
    %s176 = sphi 0, %s174
    %s177 = sphi 0, %s176
    %s191 = sphi 0, %s177
    %s197 = sphi 0, %s199
    %s200 = sphi 0, %s197
    %s201 = sphi 0, %s200
    %s217 = sphi 0, %s201
  $region4: #{encoder_forward.1} parent=0 // loop_header_branch
    %17 = sbr.rel (%p15) target = $region8
  $region5: #{encoder_forward.1} parent=0 // loop_body
    %s19 = ssub.s32 %s14, 1
    %s20 = ssub.s32 %s14, 2
    %s21 = sadd.s32 %s14, 1
    %s22 = ssub.s32 %s14, %s21
    %p23 = scmp.eq.s32.totalorder %s22, 0
    %s25 = sadd.s32 %s24, 1
    %s26 = scalar_select %p23, %s24, %s25
    %p29 = pneg %p23
    %p30 = scmp.eq.s32.totalorder %s14, 1
    %p31 = por %p29, %p30
    %p32 = scmp.ne.s32.totalorder %s24, %s27
    %p33 = scmp.eq.s32.totalorder %s14, 0
    %p34 = por %p32, %p33
    %p35 = scmp.ne.s32.totalorder %s24, %s27
    %p36 = scmp.eq.s32.totalorder %s19, 1
    %p37 = por %p35, %p36
    %p38 = scmp.ne.s32.totalorder %s27, %s28
    %p39 = scmp.eq.s32.totalorder %s19, 0
    %p40 = por %p38, %p39
    %p41 = scmp.ne.s32.totalorder %s27, %s28
    %p42 = scmp.eq.s32.totalorder %s20, 1
    %p43 = por %p41, %p42
    %p45 = scmp.ne.s32.totalorder %s28, %s44
    %p46 = scmp.eq.s32.totalorder %s20, 0
    %p47 = por %p45, %p46
    %s49 = sadd.s32 %s48, 1
    %p52 = scmp.eq.s32.totalorder %s14, 1
    %p53 = scmp.ne.s32.totalorder %s48, %s50
    %p54 = scmp.eq.s32.totalorder %s14, 0
    %p55 = por %p53, %p54
    %p56 = scmp.ne.s32.totalorder %s48, %s50
    %p57 = scmp.eq.s32.totalorder %s19, 1
    %p58 = por %p56, %p57
    %p59 = scmp.ne.s32.totalorder %s50, %s51
    %p60 = scmp.eq.s32.totalorder %s19, 0
    %p61 = por %p59, %p60
    %p62 = scmp.ne.s32.totalorder %s50, %s51
    %p63 = scmp.eq.s32.totalorder %s20, 1
    %p64 = por %p62, %p63
    %p66 = scmp.ne.s32.totalorder %s51, %s65
    %p67 = scmp.eq.s32.totalorder %s20, 0
    %p68 = por %p66, %p67
    %s70 = sadd.s32 %s69, 1
    %p73 = scmp.eq.s32.totalorder %s14, 1
    %p74 = scmp.ne.s32.totalorder %s69, %s71
    %p75 = scmp.eq.s32.totalorder %s14, 0
    %p76 = por %p74, %p75
    %p77 = scmp.ne.s32.totalorder %s69, %s71
    %p78 = scmp.eq.s32.totalorder %s19, 1
    %p79 = por %p77, %p78
    %p80 = scmp.ne.s32.totalorder %s71, %s72
    %p81 = scmp.eq.s32.totalorder %s19, 0
    %p82 = por %p80, %p81
    %p83 = scmp.ne.s32.totalorder %s71, %s72
    %p84 = scmp.eq.s32.totalorder %s20, 1
    %p85 = por %p83, %p84
    %p87 = scmp.ne.s32.totalorder %s72, %s86
    %p88 = scmp.eq.s32.totalorder %s20, 0
    %p89 = por %p87, %p88
    %s91 = sadd.s32 %s90, 1
    %p94 = scmp.eq.s32.totalorder %s14, 1
    %p95 = scmp.ne.s32.totalorder %s90, %s92
    %p96 = scmp.eq.s32.totalorder %s14, 0
    %p97 = por %p95, %p96
    %p98 = scmp.ne.s32.totalorder %s90, %s92
    %p99 = scmp.eq.s32.totalorder %s19, 1
    %p100 = por %p98, %p99
    %p101 = scmp.ne.s32.totalorder %s92, %s93
    %p102 = scmp.eq.s32.totalorder %s19, 0
    %p103 = por %p101, %p102
    %p104 = scmp.ne.s32.totalorder %s92, %s93
    %p105 = scmp.eq.s32.totalorder %s20, 1
    %p106 = por %p104, %p105
    %p108 = scmp.ne.s32.totalorder %s93, %s107
    %p109 = scmp.eq.s32.totalorder %s20, 0
    %p110 = por %p108, %p109
    %s112 = sadd.s32 %s111, 1
    %p115 = scmp.eq.s32.totalorder %s14, 1
    %p116 = scmp.ne.s32.totalorder %s111, %s113
    %p117 = scmp.eq.s32.totalorder %s14, 0
    %p118 = por %p116, %p117
    %p119 = scmp.ne.s32.totalorder %s111, %s113
    %p120 = scmp.eq.s32.totalorder %s19, 1
    %p121 = por %p119, %p120
    %p122 = scmp.ne.s32.totalorder %s113, %s114
    %p123 = scmp.eq.s32.totalorder %s19, 0
    %p124 = por %p122, %p123
    %p125 = scmp.ne.s32.totalorder %s113, %s114
    %p126 = scmp.eq.s32.totalorder %s20, 1
    %p127 = por %p125, %p126
    %p129 = scmp.ne.s32.totalorder %s114, %s128
    %p130 = scmp.eq.s32.totalorder %s20, 0
    %p131 = por %p129, %p130
    %s133 = sadd.s32 %s132, 1
    %p136 = scmp.eq.s32.totalorder %s14, 1
    %p137 = scmp.ne.s32.totalorder %s132, %s134
    %p138 = scmp.eq.s32.totalorder %s14, 0
    %p139 = por %p137, %p138
    %p140 = scmp.ne.s32.totalorder %s132, %s134
    %p141 = scmp.eq.s32.totalorder %s19, 1
    %p142 = por %p140, %p141
    %p143 = scmp.ne.s32.totalorder %s134, %s135
    %p144 = scmp.eq.s32.totalorder %s19, 0
    %p145 = por %p143, %p144
    %p146 = scmp.ne.s32.totalorder %s134, %s135
    %p147 = scmp.eq.s32.totalorder %s20, 1
    %p148 = por %p146, %p147
    %p150 = scmp.ne.s32.totalorder %s135, %s149
    %p151 = scmp.eq.s32.totalorder %s20, 0
    %p152 = por %p150, %p151
    %s154 = sadd.s32 %s153, 1
    %p157 = scmp.eq.s32.totalorder %s14, 1
    %p158 = scmp.ne.s32.totalorder %s153, %s155
    %p159 = scmp.eq.s32.totalorder %s14, 0
    %p160 = por %p158, %p159
    %p161 = scmp.ne.s32.totalorder %s153, %s155
    %p162 = scmp.eq.s32.totalorder %s19, 1
    %p163 = por %p161, %p162
    %p164 = scmp.ne.s32.totalorder %s155, %s156
    %p165 = scmp.eq.s32.totalorder %s19, 0
    %p166 = por %p164, %p165
    %p167 = scmp.ne.s32.totalorder %s155, %s156
    %p168 = scmp.eq.s32.totalorder %s20, 1
    %p169 = por %p167, %p168
    %p171 = scmp.ne.s32.totalorder %s156, %s170
    %p172 = scmp.eq.s32.totalorder %s20, 0
    %p173 = por %p171, %p172
    %s175 = sadd.s32 %s174, 1
    %p178 = scmp.eq.s32.totalorder %s14, 1
    %p179 = scmp.ne.s32.totalorder %s174, %s176
    %p180 = scmp.eq.s32.totalorder %s14, 0
    %p181 = por %p179, %p180
    %p182 = scmp.ne.s32.totalorder %s174, %s176
    %p183 = scmp.eq.s32.totalorder %s19, 1
    %p184 = por %p182, %p183
    %p185 = scmp.ne.s32.totalorder %s176, %s177
    %p186 = scmp.eq.s32.totalorder %s19, 0
    %p187 = por %p185, %p186
    %p188 = scmp.ne.s32.totalorder %s176, %s177
    %p189 = scmp.eq.s32.totalorder %s20, 1
    %p190 = por %p188, %p189
    %p192 = scmp.ne.s32.totalorder %s177, %s191
    %p193 = scmp.eq.s32.totalorder %s20, 0
    %p194 = por %p192, %p193
    %s195 = ssub.s32 %s14, %s21
    %p196 = scmp.eq.s32.totalorder %s195, 0
    %s198 = sadd.s32 %s197, 1
    %s199 = scalar_select %p196, %s197, %s198
    %p202 = pneg %p196
    %p203 = scmp.eq.s32.totalorder %s14, 1
    %p204 = por %p202, %p203
    %p205 = scmp.ne.s32.totalorder %s197, %s200
    %p206 = scmp.eq.s32.totalorder %s14, 0
    %p207 = por %p205, %p206
    %p208 = scmp.ne.s32.totalorder %s197, %s200
    %p209 = scmp.eq.s32.totalorder %s19, 1
    %p210 = por %p208, %p209
    %p211 = scmp.ne.s32.totalorder %s200, %s201
    %p212 = scmp.eq.s32.totalorder %s19, 0
    %p213 = por %p211, %p212
    %p214 = scmp.ne.s32.totalorder %s200, %s201
    %p215 = scmp.eq.s32.totalorder %s20, 1
    %p216 = por %p214, %p215
    %p218 = scmp.ne.s32.totalorder %s201, %s217
    %p219 = scmp.eq.s32.totalorder %s20, 0
    %p220 = por %p218, %p219
    %p221 = scmp.le.s32.totalorder 1, %s14
    %p222 = scmp.lt.s32.totalorder %s14, 3
    %p223 = pnand %p221, %p222
    %p224 = pneg %p223
    // Predicated region
    $region9: #{encoder_forward.1} parent=5 // pred_check
      _
    $region10: #{encoder_forward.1} parent=5 // pred_check_branch
      %226 = sbr.rel (%p223) target = $region12
    $region11: #{encoder_forward.1} parent=5 // pred_region
      %s227 = ssub.s32 %s14, 1
      // Predicated region
      $region13: #{encoder_forward.1} parent=11 // pred_check
        %p228 = pneg %p61
      $region14: #{encoder_forward.1} parent=11 // pred_check_branch
        %230 = sbr.rel (%p228) target = $region16
      $region15: #{encoder_forward.1} parent=11 // pred_region
        _
      $region16: #{encoder_forward.1} parent=11 // pred_fallthru
        _
      // Predicated region
      $region17: #{encoder_forward.1} parent=11 // pred_check
        %p231 = pneg %p82
      $region18: #{encoder_forward.1} parent=11 // pred_check_branch
        %233 = sbr.rel (%p231) target = $region20
      $region19: #{encoder_forward.1} parent=11 // pred_region
        _
      $region20: #{encoder_forward.1} parent=11 // pred_fallthru
        _
      // Predicated region
      $region21: #{encoder_forward.1} parent=11 // pred_check
        %p234 = pneg %p103
      $region22: #{encoder_forward.1} parent=11 // pred_check_branch
        %236 = sbr.rel (%p234) target = $region24
      $region23: #{encoder_forward.1} parent=11 // pred_region
        _
      $region24: #{encoder_forward.1} parent=11 // pred_fallthru
        _
      // Predicated region
      $region25: #{encoder_forward.1} parent=11 // pred_check
        %p237 = pneg %p124
      $region26: #{encoder_forward.1} parent=11 // pred_check_branch
        %239 = sbr.rel (%p237) target = $region28
      $region27: #{encoder_forward.1} parent=11 // pred_region
        _
      $region28: #{encoder_forward.1} parent=11 // pred_fallthru
        _
      // Predicated region
      $region29: #{encoder_forward.1} parent=11 // pred_check
        %p240 = pneg %p145
      $region30: #{encoder_forward.1} parent=11 // pred_check_branch
        %242 = sbr.rel (%p240) target = $region32
      $region31: #{encoder_forward.1} parent=11 // pred_region
        _
      $region32: #{encoder_forward.1} parent=11 // pred_fallthru
        _
      // Predicated region
      $region33: #{encoder_forward.1} parent=11 // pred_check
        %p243 = pneg %p166
      $region34: #{encoder_forward.1} parent=11 // pred_check_branch
        %245 = sbr.rel (%p243) target = $region36
      $region35: #{encoder_forward.1} parent=11 // pred_region
        _
      $region36: #{encoder_forward.1} parent=11 // pred_fallthru
        _
      // Predicated region
      $region37: #{encoder_forward.1} parent=11 // pred_check
        %p246 = pneg %p187
      $region38: #{encoder_forward.1} parent=11 // pred_check_branch
        %248 = sbr.rel (%p246) target = $region40
      $region39: #{encoder_forward.1} parent=11 // pred_region
        _
      $region40: #{encoder_forward.1} parent=11 // pred_fallthru
        _
    $region12: #{encoder_forward.1} parent=5 // pred_fallthru
      _
    %p249 = scmp.lt.s32.totalorder %s14, 2
    // Predicated region
    $region41: #{encoder_forward.1} parent=5 // pred_check
      %p250 = pneg %p249
    $region42: #{encoder_forward.1} parent=5 // pred_check_branch
      %252 = sbr.rel (%p250) target = $region44
    $region43: #{encoder_forward.1} parent=5 // pred_region
      // Predicated region
      $region45: #{encoder_forward.1} parent=43 // pred_check
        %p253 = pneg %p34
      $region46: #{encoder_forward.1} parent=43 // pred_check_branch
        %255 = sbr.rel (%p253) target = $region48
      $region47: #{encoder_forward.1} parent=43 // pred_region
        %p256 = scmp.lt.s32.totalorder %s14, 1
        %s257 = scalar_select %p256, %s14, 1
        %s258 = smul.addr %s257, 4
        %s259 = smul.addr %s258, 8
        %s260 = scalar_lea.vmem %s0, %s259
      $region48: #{encoder_forward.1} parent=43 // pred_fallthru
        _
    $region44: #{encoder_forward.1} parent=5 // pred_fallthru
      _
    %p261 = scmp.le.s32.totalorder 1, %s14
    %p262 = scmp.lt.s32.totalorder %s14, 3
    %p263 = pnand %p261, %p262
    %p264 = pneg %p263
    // Predicated region
    $region49: #{encoder_forward.1} parent=5 // pred_check
      _
    $region50: #{encoder_forward.1} parent=5 // pred_check_branch
      %266 = sbr.rel (%p263) target = $region52
    $region51: #{encoder_forward.1} parent=5 // pred_region
      %s267 = ssub.s32 %s14, 1
      %p268 = scmp.lt.s32.totalorder %s19, 1
      %s269 = scalar_select %p268, %s19, 1
      %s270 = smul.addr %s269, 4
      %s271 = smul.addr %s270, 8
      %s272 = scalar_lea.vmem %s0, %s271
      %p273 = pneg %p40
      %p274 = pneg %p37
      %p275 = pneg %p61
      %p276 = pneg %p58
      %p277 = pneg %p82
      %p278 = pneg %p79
      %p279 = pneg %p103
      %p280 = pneg %p100
      %p281 = pneg %p124
      %p282 = pneg %p121
      %p283 = pneg %p145
      %p284 = pneg %p142
      %p285 = pneg %p166
      %p286 = pneg %p163
      %p287 = pneg %p187
      %p288 = pneg %p184
      %p289 = pneg %p213
      %p290 = pneg %p210
      %p291 = scmp.lt.s32.totalorder %s19, 1
      %s292 = scalar_select %p291, %s19, 1
      %s293 = scalar_lea.vmem %s8, %s292
      %p294 = scmp.lt.s32.totalorder %s19, 1
      %s295 = scalar_select %p294, %s19, 1
      %s296 = smul.addr %s295, 4
      %s297 = smul.addr %s296, 8
      %s298 = scalar_lea.vmem %s0, %s297
      %p299 = scmp.lt.s32.totalorder %s19, 1
      %s300 = scalar_select %p299, %s19, 1
      %s301 = scalar_lea.vmem %s8, %s300
      %v302 = vld [vmem:[%s1] sm:$0xff]
      %v303 = vld [vmem:[%s298] sm:$0xff]
      %v304 = vld [vmem:[%s298 + $0x8] sm:$0xff]
      %v305 = vld [vmem:[%s298 + $0x10] sm:$0xff]
      %v306 = vld [vmem:[%s298 + $0x18] sm:$0xff]
      %v307 = vld [vmem:[%s2] sm:$0xff]
      %309 = vset.pattern.permute.xlu0 0
      %310 = vperm.xlu0 %309, %v307
      %v311 = vpop.permute.xlu0 %310
      %vm313 = vcmask 130048
      %v315 = vsel %vm313, %v302, 0
      %317 = vmatpush.msra.mxu0 0.0
      %318 = vmatpush.msra.mxu0 0.0
      %319 = vmatpush.msra.mxu0 0.0
      %320 = vmatpush.msra.mxu0 0.0
      %321 = vmatpush.msra.mxu0 0.0
      %322 = vmatpush.msra.mxu0 0.0
      %323 = vmatpush.msra.mxu0 0.0
      %324 = vmatpush.msra.mxu0 0.0
      %325 = vmatpush.msra.mxu0 0.0
      %326 = vmatpush.msra.mxu0 0.0
      %327 = vmatpush.msra.mxu0 0.0
      %328 = vmatpush.msra.mxu0 0.0
      %329 = vmatpush.msra.mxu0 0.0
      %330 = vmatpush.msra.mxu0 0.0
      %331 = vmatpush.msra.mxu0 %v305
      %332 = vmatpush.msra.mxu0 %v303
      %333 = vmatmul.f32.gmra.mxu0 %v315
      %v334 = vpop.f32.mrf.mxu0
      %v335 = vadd.f32 %v311, %v334
      %336 = vdwg.mxu0
      %337 = vmatpush.msra.mxu0 0.0
      %338 = vmatpush.msra.mxu0 0.0
      %339 = vmatpush.msra.mxu0 0.0
      %340 = vmatpush.msra.mxu0 0.0
      %341 = vmatpush.msra.mxu0 0.0
      %342 = vmatpush.msra.mxu0 0.0
      %343 = vmatpush.msra.mxu0 0.0
      %344 = vmatpush.msra.mxu0 0.0
      %345 = vmatpush.msra.mxu0 0.0
      %346 = vmatpush.msra.mxu0 0.0
      %347 = vmatpush.msra.mxu0 0.0
      %348 = vmatpush.msra.mxu0 0.0
      %349 = vmatpush.msra.mxu0 0.0
      %350 = vmatpush.msra.mxu0 0.0
      %351 = vmatpush.msra.mxu0 %v306
      %352 = vmatpush.msra.mxu0 %v304
      %353 = vmatmul.f32.gmra.mxu0 %v315
      %v354 = vpop.f32.mrf.mxu0
      %v355 = vadd.f32 %v311, %v354
      %356 = vdwg.mxu0
      %v357 = vmax.f32 %v335, 0.0
      %v358 = vmax.f32 %v355, 0.0
      %v359 = vld [vmem:[%s3] sm:$0xff]
      %v360 = vld [vmem:[%s3 + $0x8] sm:$0xff]
      %v361 = vld [vmem:[%s3 + $0x10] sm:$0xff]
      %v362 = vld [vmem:[%s3 + $0x18] sm:$0xff]
      %v363 = vld [vmem:[%s3 + $0x20] sm:$0xff]
      %v364 = vld [vmem:[%s3 + $0x28] sm:$0xff]
      %v365 = vld [vmem:[%s3 + $0x30] sm:$0xff]
      %v366 = vld [vmem:[%s3 + $0x38] sm:$0xff]
      %v367 = vld [vmem:[%s3 + $0x40] sm:$0xff]
      %v368 = vld [vmem:[%s3 + $0x48] sm:$0xff]
      %v369 = vld [vmem:[%s3 + $0x50] sm:$0xff]
      %v370 = vld [vmem:[%s3 + $0x58] sm:$0xff]
      %v371 = vld [vmem:[%s3 + $0x60] sm:$0xff]
      %v372 = vld [vmem:[%s3 + $0x68] sm:$0xff]
      %v373 = vld [vmem:[%s3 + $0x70] sm:$0xff]
      %v374 = vld [vmem:[%s3 + $0x78] sm:$0xff]
      %v375 = vld [vmem:[%s3 + $0x80] sm:$0xff]
      %v376 = vld [vmem:[%s3 + $0x88] sm:$0xff]
      %v377 = vld [vmem:[%s3 + $0x90] sm:$0xff]
      %v378 = vld [vmem:[%s3 + $0x98] sm:$0xff]
      %v379 = vld [vmem:[%s3 + $0xa0] sm:$0xff]
      %v380 = vld [vmem:[%s3 + $0xa8] sm:$0xff]
      %v381 = vld [vmem:[%s3 + $0xb0] sm:$0xff]
      %v382 = vld [vmem:[%s3 + $0xb8] sm:$0xff]
      %v383 = vld [vmem:[%s3 + $0xc0] sm:$0xf]
      %vm384 = vcmask 556032
      %v386 = vsel %vm384, %v358, 0
      %vm388 = vcmask 1043456
      %v390 = vsel %vm388, %v383, 0
      %392 = vmatpush.msra.mxu0 %v374
      %393 = vmatpush.msra.mxu0 %v373
      %394 = vmatpush.msra.mxu0 %v372
      %395 = vmatpush.msra.mxu0 %v371
      %396 = vmatpush.msra.mxu0 %v370
      %397 = vmatpush.msra.mxu0 %v369
      %398 = vmatpush.msra.mxu0 %v368
      %399 = vmatpush.msra.mxu0 %v367
      %400 = vmatpush.msra.mxu0 %v366
      %401 = vmatpush.msra.mxu0 %v365
      %402 = vmatpush.msra.mxu0 %v364
      %403 = vmatpush.msra.mxu0 %v363
      %404 = vmatpush.msra.mxu0 %v362
      %405 = vmatpush.msra.mxu0 %v361
      %406 = vmatpush.msra.mxu0 %v360
      %407 = vmatpush.msra.mxu0 %v359
      %408 = vmatmul.f32.gmra.mxu0 %v357
      %v409 = vpop.f32.mrf.mxu0
      %v410 = vadd.f32 0.0, %v409
      %411 = vdwg.mxu0
      %412 = vmatpush.msra.mxu0 0.0
      %413 = vmatpush.msra.mxu0 0.0
      %414 = vmatpush.msra.mxu0 0.0
      %415 = vmatpush.msra.mxu0 0.0
      %416 = vmatpush.msra.mxu0 0.0
      %417 = vmatpush.msra.mxu0 0.0
      %418 = vmatpush.msra.mxu0 0.0
      %419 = vmatpush.msra.mxu0 %v390
      %420 = vmatpush.msra.mxu0 %v382
      %421 = vmatpush.msra.mxu0 %v381
      %422 = vmatpush.msra.mxu0 %v380
      %423 = vmatpush.msra.mxu0 %v379
      %424 = vmatpush.msra.mxu0 %v378
      %425 = vmatpush.msra.mxu0 %v377
      %426 = vmatpush.msra.mxu0 %v376
      %427 = vmatpush.msra.mxu0 %v375
      %428 = vmatmul.f32.gmra.mxu0 %v386
      %v429 = vpop.f32.mrf.mxu0
      %v430 = vadd.f32 %v410, %v429
      %431 = vdwg.mxu0
      %vm432 = vcmask 400384
      %433 = vst.msk [vmem:[#allocation2] sm:$0xff] %vm432, %v430
      %s434 = scalar_lea.vmem %s3, 200
      %v435 = vld [vmem:[%s434] sm:$0xff]
      %v436 = vld [vmem:[%s434 + $0x8] sm:$0xff]
      %v437 = vld [vmem:[%s434 + $0x10] sm:$0xff]
      %v438 = vld [vmem:[%s434 + $0x18] sm:$0xff]
      %v439 = vld [vmem:[%s434 + $0x20] sm:$0xff]
      %v440 = vld [vmem:[%s434 + $0x28] sm:$0xff]
      %v441 = vld [vmem:[%s434 + $0x30] sm:$0xff]
      %v442 = vld [vmem:[%s434 + $0x38] sm:$0xff]
      %v443 = vld [vmem:[%s434 + $0x40] sm:$0xff]
      %v444 = vld [vmem:[%s434 + $0x48] sm:$0xff]
      %v445 = vld [vmem:[%s434 + $0x50] sm:$0xff]
      %v446 = vld [vmem:[%s434 + $0x58] sm:$0xff]
      %v447 = vld [vmem:[%s434 + $0x60] sm:$0xff]
      %v448 = vld [vmem:[%s434 + $0x68] sm:$0xff]
      %v449 = vld [vmem:[%s434 + $0x70] sm:$0xff]
      %v450 = vld [vmem:[%s434 + $0x78] sm:$0xff]
      %v451 = vld [vmem:[%s434 + $0x80] sm:$0xff]
      %v452 = vld [vmem:[%s434 + $0x88] sm:$0xff]
      %v453 = vld [vmem:[%s434 + $0x90] sm:$0xff]
      %v454 = vld [vmem:[%s434 + $0x98] sm:$0xff]
      %v455 = vld [vmem:[%s434 + $0xa0] sm:$0xff]
      %v456 = vld [vmem:[%s434 + $0xa8] sm:$0xff]
      %v457 = vld [vmem:[%s434 + $0xb0] sm:$0xff]
      %v458 = vld [vmem:[%s434 + $0xb8] sm:$0xff]
      %v459 = vld [vmem:[%s434 + $0xc0] sm:$0xf]
      %v461 = vsel %vm388, %v459, 0
      %463 = vmatpush.msra.mxu0 %v450
      %464 = vmatpush.msra.mxu0 %v449
      %465 = vmatpush.msra.mxu0 %v448
      %466 = vmatpush.msra.mxu0 %v447
      %467 = vmatpush.msra.mxu0 %v446
      %468 = vmatpush.msra.mxu0 %v445
      %469 = vmatpush.msra.mxu0 %v444
      %470 = vmatpush.msra.mxu0 %v443
      %471 = vmatpush.msra.mxu0 %v442
      %472 = vmatpush.msra.mxu0 %v441
      %473 = vmatpush.msra.mxu0 %v440
      %474 = vmatpush.msra.mxu0 %v439
      %475 = vmatpush.msra.mxu0 %v438
      %476 = vmatpush.msra.mxu0 %v437
      %477 = vmatpush.msra.mxu0 %v436
      %478 = vmatpush.msra.mxu0 %v435
      %479 = vmatmul.f32.gmra.mxu0 %v357
      %v480 = vpop.f32.mrf.mxu0
      %v481 = vadd.f32 0.0, %v480
      %482 = vdwg.mxu0
      %483 = vmatpush.msra.mxu0 0.0
      %484 = vmatpush.msra.mxu0 0.0
      %485 = vmatpush.msra.mxu0 0.0
      %486 = vmatpush.msra.mxu0 0.0
      %487 = vmatpush.msra.mxu0 0.0
      %488 = vmatpush.msra.mxu0 0.0
      %489 = vmatpush.msra.mxu0 0.0
      %490 = vmatpush.msra.mxu0 %v461
      %491 = vmatpush.msra.mxu0 %v458
      %492 = vmatpush.msra.mxu0 %v457
      %493 = vmatpush.msra.mxu0 %v456
      %494 = vmatpush.msra.mxu0 %v455
      %495 = vmatpush.msra.mxu0 %v454
      %496 = vmatpush.msra.mxu0 %v453
      %497 = vmatpush.msra.mxu0 %v452
      %498 = vmatpush.msra.mxu0 %v451
      %499 = vmatmul.f32.gmra.mxu0 %v386
      %v500 = vpop.f32.mrf.mxu0
      %v501 = vadd.f32 %v481, %v500
      %502 = vdwg.mxu0
      %503 = vst.msk [vmem:[#allocation2 + $0x8] sm:$0xff] %vm432, %v501
      %s504 = scalar_lea.vmem %s3, 400
      %v505 = vld [vmem:[%s504] sm:$0xff]
      %v506 = vld [vmem:[%s504 + $0x8] sm:$0xff]
      %v507 = vld [vmem:[%s504 + $0x10] sm:$0xff]
      %v508 = vld [vmem:[%s504 + $0x18] sm:$0xff]
      %v509 = vld [vmem:[%s504 + $0x20] sm:$0xff]
      %v510 = vld [vmem:[%s504 + $0x28] sm:$0xff]
      %v511 = vld [vmem:[%s504 + $0x30] sm:$0xff]
      %v512 = vld [vmem:[%s504 + $0x38] sm:$0xff]
      %v513 = vld [vmem:[%s504 + $0x40] sm:$0xff]
      %v514 = vld [vmem:[%s504 + $0x48] sm:$0xff]
      %v515 = vld [vmem:[%s504 + $0x50] sm:$0xff]
      %v516 = vld [vmem:[%s504 + $0x58] sm:$0xff]
      %v517 = vld [vmem:[%s504 + $0x60] sm:$0xff]
      %v518 = vld [vmem:[%s504 + $0x68] sm:$0xff]
      %v519 = vld [vmem:[%s504 + $0x70] sm:$0xff]
      %v520 = vld [vmem:[%s504 + $0x78] sm:$0xff]
      %v521 = vld [vmem:[%s504 + $0x80] sm:$0xff]
      %v522 = vld [vmem:[%s504 + $0x88] sm:$0xff]
      %v523 = vld [vmem:[%s504 + $0x90] sm:$0xff]
      %v524 = vld [vmem:[%s504 + $0x98] sm:$0xff]
      %v525 = vld [vmem:[%s504 + $0xa0] sm:$0xff]
      %v526 = vld [vmem:[%s504 + $0xa8] sm:$0xff]
      %v527 = vld [vmem:[%s504 + $0xb0] sm:$0xff]
      %v528 = vld [vmem:[%s504 + $0xb8] sm:$0xff]
      %v529 = vld [vmem:[%s504 + $0xc0] sm:$0xf]
      %v531 = vsel %vm388, %v529, 0
      %533 = vmatpush.msra.mxu0 %v520
      %534 = vmatpush.msra.mxu0 %v519
      %535 = vmatpush.msra.mxu0 %v518
      %536 = vmatpush.msra.mxu0 %v517
      %537 = vmatpush.msra.mxu0 %v516
      %538 = vmatpush.msra.mxu0 %v515
      %539 = vmatpush.msra.mxu0 %v514
      %540 = vmatpush.msra.mxu0 %v513
      %541 = vmatpush.msra.mxu0 %v512
      %542 = vmatpush.msra.mxu0 %v511
      %543 = vmatpush.msra.mxu0 %v510
      %544 = vmatpush.msra.mxu0 %v509
      %545 = vmatpush.msra.mxu0 %v508
      %546 = vmatpush.msra.mxu0 %v507
      %547 = vmatpush.msra.mxu0 %v506
      %548 = vmatpush.msra.mxu0 %v505
      %549 = vmatmul.f32.gmra.mxu0 %v357
      %v550 = vpop.f32.mrf.mxu0
      %v551 = vadd.f32 0.0, %v550
      %552 = vdwg.mxu0
      %553 = vmatpush.msra.mxu0 0.0
      %554 = vmatpush.msra.mxu0 0.0
      %555 = vmatpush.msra.mxu0 0.0
      %556 = vmatpush.msra.mxu0 0.0
      %557 = vmatpush.msra.mxu0 0.0
      %558 = vmatpush.msra.mxu0 0.0
      %559 = vmatpush.msra.mxu0 0.0
      %560 = vmatpush.msra.mxu0 %v531
      %561 = vmatpush.msra.mxu0 %v528
      %562 = vmatpush.msra.mxu0 %v527
      %563 = vmatpush.msra.mxu0 %v526
      %564 = vmatpush.msra.mxu0 %v525
      %565 = vmatpush.msra.mxu0 %v524
      %566 = vmatpush.msra.mxu0 %v523
      %567 = vmatpush.msra.mxu0 %v522
      %568 = vmatpush.msra.mxu0 %v521
      %569 = vmatmul.f32.gmra.mxu0 %v386
      %v570 = vpop.f32.mrf.mxu0
      %v571 = vadd.f32 %v551, %v570
      %572 = vdwg.mxu0
      %573 = vst.msk [vmem:[#allocation2 + $0x10] sm:$0xff] %vm432, %v571
      %s574 = scalar_lea.vmem %s3, 600
      %v575 = vld [vmem:[%s574] sm:$0xff]
      %v576 = vld [vmem:[%s574 + $0x8] sm:$0xff]
      %v577 = vld [vmem:[%s574 + $0x10] sm:$0xff]
      %v578 = vld [vmem:[%s574 + $0x18] sm:$0xff]
      %v579 = vld [vmem:[%s574 + $0x20] sm:$0xff]
      %v580 = vld [vmem:[%s574 + $0x28] sm:$0xff]
      %v581 = vld [vmem:[%s574 + $0x30] sm:$0xff]
      %v582 = vld [vmem:[%s574 + $0x38] sm:$0xff]
      %v583 = vld [vmem:[%s574 + $0x40] sm:$0xff]
      %v584 = vld [vmem:[%s574 + $0x48] sm:$0xff]
      %v585 = vld [vmem:[%s574 + $0x50] sm:$0xff]
      %v586 = vld [vmem:[%s574 + $0x58] sm:$0xff]
      %v587 = vld [vmem:[%s574 + $0x60] sm:$0xff]
      %v588 = vld [vmem:[%s574 + $0x68] sm:$0xff]
      %v589 = vld [vmem:[%s574 + $0x70] sm:$0xff]
      %v590 = vld [vmem:[%s574 + $0x78] sm:$0xff]
      %v591 = vld [vmem:[%s574 + $0x80] sm:$0xff]
      %v592 = vld [vmem:[%s574 + $0x88] sm:$0xff]
      %v593 = vld [vmem:[%s574 + $0x90] sm:$0xff]
      %v594 = vld [vmem:[%s574 + $0x98] sm:$0xff]
      %v595 = vld [vmem:[%s574 + $0xa0] sm:$0xff]
      %v596 = vld [vmem:[%s574 + $0xa8] sm:$0xff]
      %v597 = vld [vmem:[%s574 + $0xb0] sm:$0xff]
      %v598 = vld [vmem:[%s574 + $0xb8] sm:$0xff]
      %v599 = vld [vmem:[%s574 + $0xc0] sm:$0xf]
      %v601 = vsel %vm388, %v599, 0
      %603 = vmatpush.msra.mxu0 %v590
      %604 = vmatpush.msra.mxu0 %v589
      %605 = vmatpush.msra.mxu0 %v588
      %606 = vmatpush.msra.mxu0 %v587
      %607 = vmatpush.msra.mxu0 %v586
      %608 = vmatpush.msra.mxu0 %v585
      %609 = vmatpush.msra.mxu0 %v584
      %610 = vmatpush.msra.mxu0 %v583
      %611 = vmatpush.msra.mxu0 %v582
      %612 = vmatpush.msra.mxu0 %v581
      %613 = vmatpush.msra.mxu0 %v580
      %614 = vmatpush.msra.mxu0 %v579
      %615 = vmatpush.msra.mxu0 %v578
      %616 = vmatpush.msra.mxu0 %v577
      %617 = vmatpush.msra.mxu0 %v576
      %618 = vmatpush.msra.mxu0 %v575
      %619 = vmatmul.f32.gmra.mxu0 %v357
      %v620 = vpop.f32.mrf.mxu0
      %v621 = vadd.f32 0.0, %v620
      %622 = vdwg.mxu0
      %623 = vmatpush.msra.mxu0 0.0
      %624 = vmatpush.msra.mxu0 0.0
      %625 = vmatpush.msra.mxu0 0.0
      %626 = vmatpush.msra.mxu0 0.0
      %627 = vmatpush.msra.mxu0 0.0
      %628 = vmatpush.msra.mxu0 0.0
      %629 = vmatpush.msra.mxu0 0.0
      %630 = vmatpush.msra.mxu0 %v601
      %631 = vmatpush.msra.mxu0 %v598
      %632 = vmatpush.msra.mxu0 %v597
      %633 = vmatpush.msra.mxu0 %v596
      %634 = vmatpush.msra.mxu0 %v595
      %635 = vmatpush.msra.mxu0 %v594
      %636 = vmatpush.msra.mxu0 %v593
      %637 = vmatpush.msra.mxu0 %v592
      %638 = vmatpush.msra.mxu0 %v591
      %639 = vmatmul.f32.gmra.mxu0 %v386
      %v640 = vpop.f32.mrf.mxu0
      %v641 = vadd.f32 %v621, %v640
      %642 = vdwg.mxu0
      %643 = vst.msk [vmem:[#allocation2 + $0x18] sm:$0xff] %vm432, %v641
      %s644 = scalar_lea.vmem %s3, 800
      %v645 = vld [vmem:[%s644] sm:$0xff]
      %v646 = vld [vmem:[%s644 + $0x8] sm:$0xff]
      %v647 = vld [vmem:[%s644 + $0x10] sm:$0xff]
      %v648 = vld [vmem:[%s644 + $0x18] sm:$0xff]
      %v649 = vld [vmem:[%s644 + $0x20] sm:$0xff]
      %v650 = vld [vmem:[%s644 + $0x28] sm:$0xff]
      %v651 = vld [vmem:[%s644 + $0x30] sm:$0xff]
      %v652 = vld [vmem:[%s644 + $0x38] sm:$0xff]
      %v653 = vld [vmem:[%s644 + $0x40] sm:$0xff]
      %v654 = vld [vmem:[%s644 + $0x48] sm:$0xff]
      %v655 = vld [vmem:[%s644 + $0x50] sm:$0xff]
      %v656 = vld [vmem:[%s644 + $0x58] sm:$0xff]
      %v657 = vld [vmem:[%s644 + $0x60] sm:$0xff]
      %v658 = vld [vmem:[%s644 + $0x68] sm:$0xff]
      %v659 = vld [vmem:[%s644 + $0x70] sm:$0xff]
      %v660 = vld [vmem:[%s644 + $0x78] sm:$0xff]
      %v661 = vld [vmem:[%s644 + $0x80] sm:$0xff]
      %v662 = vld [vmem:[%s644 + $0x88] sm:$0xff]
      %v663 = vld [vmem:[%s644 + $0x90] sm:$0xff]
      %v664 = vld [vmem:[%s644 + $0x98] sm:$0xff]
      %v665 = vld [vmem:[%s644 + $0xa0] sm:$0xff]
      %v666 = vld [vmem:[%s644 + $0xa8] sm:$0xff]
      %v667 = vld [vmem:[%s644 + $0xb0] sm:$0xff]
      %v668 = vld [vmem:[%s644 + $0xb8] sm:$0xff]
      %v669 = vld [vmem:[%s644 + $0xc0] sm:$0xf]
      %v671 = vsel %vm388, %v669, 0
      %673 = vmatpush.msra.mxu0 %v660
      %674 = vmatpush.msra.mxu0 %v659
      %675 = vmatpush.msra.mxu0 %v658
      %676 = vmatpush.msra.mxu0 %v657
      %677 = vmatpush.msra.mxu0 %v656
      %678 = vmatpush.msra.mxu0 %v655
      %679 = vmatpush.msra.mxu0 %v654
      %680 = vmatpush.msra.mxu0 %v653
      %681 = vmatpush.msra.mxu0 %v652
      %682 = vmatpush.msra.mxu0 %v651
      %683 = vmatpush.msra.mxu0 %v650
      %684 = vmatpush.msra.mxu0 %v649
      %685 = vmatpush.msra.mxu0 %v648
      %686 = vmatpush.msra.mxu0 %v647
      %687 = vmatpush.msra.mxu0 %v646
      %688 = vmatpush.msra.mxu0 %v645
      %689 = vmatmul.f32.gmra.mxu0 %v357
      %v690 = vpop.f32.mrf.mxu0
      %v691 = vadd.f32 0.0, %v690
      %692 = vdwg.mxu0
      %693 = vmatpush.msra.mxu0 0.0
      %694 = vmatpush.msra.mxu0 0.0
      %695 = vmatpush.msra.mxu0 0.0
      %696 = vmatpush.msra.mxu0 0.0
      %697 = vmatpush.msra.mxu0 0.0
      %698 = vmatpush.msra.mxu0 0.0
      %699 = vmatpush.msra.mxu0 0.0
      %700 = vmatpush.msra.mxu0 %v671
      %701 = vmatpush.msra.mxu0 %v668
      %702 = vmatpush.msra.mxu0 %v667
      %703 = vmatpush.msra.mxu0 %v666
      %704 = vmatpush.msra.mxu0 %v665
      %705 = vmatpush.msra.mxu0 %v664
      %706 = vmatpush.msra.mxu0 %v663
      %707 = vmatpush.msra.mxu0 %v662
      %708 = vmatpush.msra.mxu0 %v661
      %709 = vmatmul.f32.gmra.mxu0 %v386
      %v710 = vpop.f32.mrf.mxu0
      %v711 = vadd.f32 %v691, %v710
      %712 = vdwg.mxu0
      %713 = vst.msk [vmem:[#allocation2 + $0x20] sm:$0xff] %vm432, %v711
      %s714 = scalar_lea.vmem %s3, 1000
      %v715 = vld [vmem:[%s714] sm:$0xff]
      %v716 = vld [vmem:[%s714 + $0x8] sm:$0xff]
      %v717 = vld [vmem:[%s714 + $0x10] sm:$0xff]
      %v718 = vld [vmem:[%s714 + $0x18] sm:$0xff]
      %v719 = vld [vmem:[%s714 + $0x20] sm:$0xff]
      %v720 = vld [vmem:[%s714 + $0x28] sm:$0xff]
      %v721 = vld [vmem:[%s714 + $0x30] sm:$0xff]
      %v722 = vld [vmem:[%s714 + $0x38] sm:$0xff]
      %v723 = vld [vmem:[%s714 + $0x40] sm:$0xff]
      %v724 = vld [vmem:[%s714 + $0x48] sm:$0xff]
      %v725 = vld [vmem:[%s714 + $0x50] sm:$0xff]
      %v726 = vld [vmem:[%s714 + $0x58] sm:$0xff]
      %v727 = vld [vmem:[%s714 + $0x60] sm:$0xff]
      %v728 = vld [vmem:[%s714 + $0x68] sm:$0xff]
      %v729 = vld [vmem:[%s714 + $0x70] sm:$0xff]
      %v730 = vld [vmem:[%s714 + $0x78] sm:$0xff]
      %v731 = vld [vmem:[%s714 + $0x80] sm:$0xff]
      %v732 = vld [vmem:[%s714 + $0x88] sm:$0xff]
      %v733 = vld [vmem:[%s714 + $0x90] sm:$0xff]
      %v734 = vld [vmem:[%s714 + $0x98] sm:$0xff]
      %v735 = vld [vmem:[%s714 + $0xa0] sm:$0xff]
      %v736 = vld [vmem:[%s714 + $0xa8] sm:$0xff]
      %v737 = vld [vmem:[%s714 + $0xb0] sm:$0xff]
      %v738 = vld [vmem:[%s714 + $0xb8] sm:$0xff]
      %v739 = vld [vmem:[%s714 + $0xc0] sm:$0xf]
      %v741 = vsel %vm388, %v739, 0
      %743 = vmatpush.msra.mxu0 %v730
      %744 = vmatpush.msra.mxu0 %v729
      %745 = vmatpush.msra.mxu0 %v728
      %746 = vmatpush.msra.mxu0 %v727
      %747 = vmatpush.msra.mxu0 %v726
      %748 = vmatpush.msra.mxu0 %v725
      %749 = vmatpush.msra.mxu0 %v724
      %750 = vmatpush.msra.mxu0 %v723
      %751 = vmatpush.msra.mxu0 %v722
      %752 = vmatpush.msra.mxu0 %v721
      %753 = vmatpush.msra.mxu0 %v720
      %754 = vmatpush.msra.mxu0 %v719
      %755 = vmatpush.msra.mxu0 %v718
      %756 = vmatpush.msra.mxu0 %v717
      %757 = vmatpush.msra.mxu0 %v716
      %758 = vmatpush.msra.mxu0 %v715
      %759 = vmatmul.f32.gmra.mxu0 %v357
      %v760 = vpop.f32.mrf.mxu0
      %v761 = vadd.f32 0.0, %v760
      %762 = vdwg.mxu0
      %763 = vmatpush.msra.mxu0 0.0
      %764 = vmatpush.msra.mxu0 0.0
      %765 = vmatpush.msra.mxu0 0.0
      %766 = vmatpush.msra.mxu0 0.0
      %767 = vmatpush.msra.mxu0 0.0
      %768 = vmatpush.msra.mxu0 0.0
      %769 = vmatpush.msra.mxu0 0.0
      %770 = vmatpush.msra.mxu0 %v741
      %771 = vmatpush.msra.mxu0 %v738
      %772 = vmatpush.msra.mxu0 %v737
      %773 = vmatpush.msra.mxu0 %v736
      %774 = vmatpush.msra.mxu0 %v735
      %775 = vmatpush.msra.mxu0 %v734
      %776 = vmatpush.msra.mxu0 %v733
      %777 = vmatpush.msra.mxu0 %v732
      %778 = vmatpush.msra.mxu0 %v731
      %779 = vmatmul.f32.gmra.mxu0 %v386
      %v780 = vpop.f32.mrf.mxu0
      %v781 = vadd.f32 %v761, %v780
      %782 = vdwg.mxu0
      %783 = vst.msk [vmem:[#allocation2 + $0x28] sm:$0xff] %vm432, %v781
      %s784 = scalar_lea.vmem %s3, 1200
      %v785 = vld [vmem:[%s784] sm:$0xff]
      %v786 = vld [vmem:[%s784 + $0x8] sm:$0xff]
      %v787 = vld [vmem:[%s784 + $0x10] sm:$0xff]
      %v788 = vld [vmem:[%s784 + $0x18] sm:$0xff]
      %v789 = vld [vmem:[%s784 + $0x20] sm:$0xff]
      %v790 = vld [vmem:[%s784 + $0x28] sm:$0xff]
      %v791 = vld [vmem:[%s784 + $0x30] sm:$0xff]
      %v792 = vld [vmem:[%s784 + $0x38] sm:$0xff]
      %v793 = vld [vmem:[%s784 + $0x40] sm:$0xff]
      %v794 = vld [vmem:[%s784 + $0x48] sm:$0xff]
      %v795 = vld [vmem:[%s784 + $0x50] sm:$0xff]
      %v796 = vld [vmem:[%s784 + $0x58] sm:$0xff]
      %v797 = vld [vmem:[%s784 + $0x60] sm:$0xff]
      %v798 = vld [vmem:[%s784 + $0x68] sm:$0xff]
      %v799 = vld [vmem:[%s784 + $0x70] sm:$0xff]
      %v800 = vld [vmem:[%s784 + $0x78] sm:$0xff]
      %v801 = vld [vmem:[%s784 + $0x80] sm:$0xff]
      %v802 = vld [vmem:[%s784 + $0x88] sm:$0xff]
      %v803 = vld [vmem:[%s784 + $0x90] sm:$0xff]
      %v804 = vld [vmem:[%s784 + $0x98] sm:$0xff]
      %v805 = vld [vmem:[%s784 + $0xa0] sm:$0xff]
      %v806 = vld [vmem:[%s784 + $0xa8] sm:$0xff]
      %v807 = vld [vmem:[%s784 + $0xb0] sm:$0xff]
      %v808 = vld [vmem:[%s784 + $0xb8] sm:$0xff]
      %v809 = vld [vmem:[%s784 + $0xc0] sm:$0xf]
      %v811 = vsel %vm388, %v809, 0
      %813 = vmatpush.msra.mxu0 %v800
      %814 = vmatpush.msra.mxu0 %v799
      %815 = vmatpush.msra.mxu0 %v798
      %816 = vmatpush.msra.mxu0 %v797
      %817 = vmatpush.msra.mxu0 %v796
      %818 = vmatpush.msra.mxu0 %v795
      %819 = vmatpush.msra.mxu0 %v794
      %820 = vmatpush.msra.mxu0 %v793
      %821 = vmatpush.msra.mxu0 %v792
      %822 = vmatpush.msra.mxu0 %v791
      %823 = vmatpush.msra.mxu0 %v790
      %824 = vmatpush.msra.mxu0 %v789
      %825 = vmatpush.msra.mxu0 %v788
      %826 = vmatpush.msra.mxu0 %v787
      %827 = vmatpush.msra.mxu0 %v786
      %828 = vmatpush.msra.mxu0 %v785
      %829 = vmatmul.f32.gmra.mxu0 %v357
      %v830 = vpop.f32.mrf.mxu0
      %v831 = vadd.f32 0.0, %v830
      %832 = vdwg.mxu0
      %833 = vmatpush.msra.mxu0 0.0
      %834 = vmatpush.msra.mxu0 0.0
      %835 = vmatpush.msra.mxu0 0.0
      %836 = vmatpush.msra.mxu0 0.0
      %837 = vmatpush.msra.mxu0 0.0
      %838 = vmatpush.msra.mxu0 0.0
      %839 = vmatpush.msra.mxu0 0.0
      %840 = vmatpush.msra.mxu0 %v811
      %841 = vmatpush.msra.mxu0 %v808
      %842 = vmatpush.msra.mxu0 %v807
      %843 = vmatpush.msra.mxu0 %v806
      %844 = vmatpush.msra.mxu0 %v805
      %845 = vmatpush.msra.mxu0 %v804
      %846 = vmatpush.msra.mxu0 %v803
      %847 = vmatpush.msra.mxu0 %v802
      %848 = vmatpush.msra.mxu0 %v801
      %849 = vmatmul.f32.gmra.mxu0 %v386
      %v850 = vpop.f32.mrf.mxu0
      %v851 = vadd.f32 %v831, %v850
      %852 = vdwg.mxu0
      %853 = vst.msk [vmem:[#allocation2 + $0x30] sm:$0xff] %vm432, %v851
      %s854 = scalar_lea.vmem %s3, 1400
      %v855 = vld [vmem:[%s854] sm:$0xff]
      %v856 = vld [vmem:[%s854 + $0x8] sm:$0xff]
      %v857 = vld [vmem:[%s854 + $0x10] sm:$0xff]
      %v858 = vld [vmem:[%s854 + $0x18] sm:$0xff]
      %v859 = vld [vmem:[%s854 + $0x20] sm:$0xff]
      %v860 = vld [vmem:[%s854 + $0x28] sm:$0xff]
      %v861 = vld [vmem:[%s854 + $0x30] sm:$0xff]
      %v862 = vld [vmem:[%s854 + $0x38] sm:$0xff]
      %v863 = vld [vmem:[%s854 + $0x40] sm:$0xff]
      %v864 = vld [vmem:[%s854 + $0x48] sm:$0xff]
      %v865 = vld [vmem:[%s854 + $0x50] sm:$0xff]
      %v866 = vld [vmem:[%s854 + $0x58] sm:$0xff]
      %v867 = vld [vmem:[%s854 + $0x60] sm:$0xff]
      %v868 = vld [vmem:[%s854 + $0x68] sm:$0xff]
      %v869 = vld [vmem:[%s854 + $0x70] sm:$0xff]
      %v870 = vld [vmem:[%s854 + $0x78] sm:$0xff]
      %v871 = vld [vmem:[%s854 + $0x80] sm:$0xff]
      %v872 = vld [vmem:[%s854 + $0x88] sm:$0xff]
      %v873 = vld [vmem:[%s854 + $0x90] sm:$0xff]
      %v874 = vld [vmem:[%s854 + $0x98] sm:$0xff]
      %v875 = vld [vmem:[%s854 + $0xa0] sm:$0xff]
      %v876 = vld [vmem:[%s854 + $0xa8] sm:$0xff]
      %v877 = vld [vmem:[%s854 + $0xb0] sm:$0xff]
      %v878 = vld [vmem:[%s854 + $0xb8] sm:$0xff]
      %v879 = vld [vmem:[%s854 + $0xc0] sm:$0xf]
      %v881 = vsel %vm388, %v879, 0
      %883 = vmatpush.msra.mxu0 %v870
      %884 = vmatpush.msra.mxu0 %v869
      %885 = vmatpush.msra.mxu0 %v868
      %886 = vmatpush.msra.mxu0 %v867
      %887 = vmatpush.msra.mxu0 %v866
      %888 = vmatpush.msra.mxu0 %v865
      %889 = vmatpush.msra.mxu0 %v864
      %890 = vmatpush.msra.mxu0 %v863
      %891 = vmatpush.msra.mxu0 %v862
      %892 = vmatpush.msra.mxu0 %v861
      %893 = vmatpush.msra.mxu0 %v860
      %894 = vmatpush.msra.mxu0 %v859
      %895 = vmatpush.msra.mxu0 %v858
      %896 = vmatpush.msra.mxu0 %v857
      %897 = vmatpush.msra.mxu0 %v856
      %898 = vmatpush.msra.mxu0 %v855
      %899 = vmatmul.f32.gmra.mxu0 %v357
      %v900 = vpop.f32.mrf.mxu0
      %v901 = vadd.f32 0.0, %v900
      %902 = vdwg.mxu0
      %903 = vmatpush.msra.mxu0 0.0
      %904 = vmatpush.msra.mxu0 0.0
      %905 = vmatpush.msra.mxu0 0.0
      %906 = vmatpush.msra.mxu0 0.0
      %907 = vmatpush.msra.mxu0 0.0
      %908 = vmatpush.msra.mxu0 0.0
      %909 = vmatpush.msra.mxu0 0.0
      %910 = vmatpush.msra.mxu0 %v881
      %911 = vmatpush.msra.mxu0 %v878
      %912 = vmatpush.msra.mxu0 %v877
      %913 = vmatpush.msra.mxu0 %v876
      %914 = vmatpush.msra.mxu0 %v875
      %915 = vmatpush.msra.mxu0 %v874
      %916 = vmatpush.msra.mxu0 %v873
      %917 = vmatpush.msra.mxu0 %v872
      %918 = vmatpush.msra.mxu0 %v871
      %919 = vmatmul.f32.gmra.mxu0 %v386
      %v920 = vpop.f32.mrf.mxu0
      %v921 = vadd.f32 %v901, %v920
      %922 = vdwg.mxu0
      %923 = vst.msk [vmem:[#allocation2 + $0x38] sm:$0xff] %vm432, %v921
      %s924 = scalar_lea.vmem %s3, 1600
      %v925 = vld [vmem:[%s924] sm:$0xff]
      %v926 = vld [vmem:[%s924 + $0x8] sm:$0xff]
      %v927 = vld [vmem:[%s924 + $0x10] sm:$0xff]
      %v928 = vld [vmem:[%s924 + $0x18] sm:$0xff]
      %v929 = vld [vmem:[%s924 + $0x20] sm:$0xff]
      %v930 = vld [vmem:[%s924 + $0x28] sm:$0xff]
      %v931 = vld [vmem:[%s924 + $0x30] sm:$0xff]
      %v932 = vld [vmem:[%s924 + $0x38] sm:$0xff]
      %v933 = vld [vmem:[%s924 + $0x40] sm:$0xff]
      %v934 = vld [vmem:[%s924 + $0x48] sm:$0xff]
      %v935 = vld [vmem:[%s924 + $0x50] sm:$0xff]
      %v936 = vld [vmem:[%s924 + $0x58] sm:$0xff]
      %v937 = vld [vmem:[%s924 + $0x60] sm:$0xff]
      %v938 = vld [vmem:[%s924 + $0x68] sm:$0xff]
      %v939 = vld [vmem:[%s924 + $0x70] sm:$0xff]
      %v940 = vld [vmem:[%s924 + $0x78] sm:$0xff]
      %v941 = vld [vmem:[%s924 + $0x80] sm:$0xff]
      %v942 = vld [vmem:[%s924 + $0x88] sm:$0xff]
      %v943 = vld [vmem:[%s924 + $0x90] sm:$0xff]
      %v944 = vld [vmem:[%s924 + $0x98] sm:$0xff]
      %v945 = vld [vmem:[%s924 + $0xa0] sm:$0xff]
      %v946 = vld [vmem:[%s924 + $0xa8] sm:$0xff]
      %v947 = vld [vmem:[%s924 + $0xb0] sm:$0xff]
      %v948 = vld [vmem:[%s924 + $0xb8] sm:$0xff]
      %v949 = vld [vmem:[%s924 + $0xc0] sm:$0xf]
      %v951 = vsel %vm388, %v949, 0
      %953 = vmatpush.msra.mxu0 %v940
      %954 = vmatpush.msra.mxu0 %v939
      %955 = vmatpush.msra.mxu0 %v938
      %956 = vmatpush.msra.mxu0 %v937
      %957 = vmatpush.msra.mxu0 %v936
      %958 = vmatpush.msra.mxu0 %v935
      %959 = vmatpush.msra.mxu0 %v934
      %960 = vmatpush.msra.mxu0 %v933
      %961 = vmatpush.msra.mxu0 %v932
      %962 = vmatpush.msra.mxu0 %v931
      %963 = vmatpush.msra.mxu0 %v930
      %964 = vmatpush.msra.mxu0 %v929
      %965 = vmatpush.msra.mxu0 %v928
      %966 = vmatpush.msra.mxu0 %v927
      %967 = vmatpush.msra.mxu0 %v926
      %968 = vmatpush.msra.mxu0 %v925
      %969 = vmatmul.f32.gmra.mxu0 %v357
      %v970 = vpop.f32.mrf.mxu0
      %v971 = vadd.f32 0.0, %v970
      %972 = vdwg.mxu0
      %973 = vmatpush.msra.mxu0 0.0
      %974 = vmatpush.msra.mxu0 0.0
      %975 = vmatpush.msra.mxu0 0.0
      %976 = vmatpush.msra.mxu0 0.0
      %977 = vmatpush.msra.mxu0 0.0
      %978 = vmatpush.msra.mxu0 0.0
      %979 = vmatpush.msra.mxu0 0.0
      %980 = vmatpush.msra.mxu0 %v951
      %981 = vmatpush.msra.mxu0 %v948
      %982 = vmatpush.msra.mxu0 %v947
      %983 = vmatpush.msra.mxu0 %v946
      %984 = vmatpush.msra.mxu0 %v945
      %985 = vmatpush.msra.mxu0 %v944
      %986 = vmatpush.msra.mxu0 %v943
      %987 = vmatpush.msra.mxu0 %v942
      %988 = vmatpush.msra.mxu0 %v941
      %989 = vmatmul.f32.gmra.mxu0 %v386
      %v990 = vpop.f32.mrf.mxu0
      %v991 = vadd.f32 %v971, %v990
      %992 = vdwg.mxu0
      %993 = vst.msk [vmem:[#allocation2 + $0x40] sm:$0xff] %vm432, %v991
      %s994 = scalar_lea.vmem %s3, 1800
      %v995 = vld [vmem:[%s994] sm:$0xff]
      %v996 = vld [vmem:[%s994 + $0x8] sm:$0xff]
      %v997 = vld [vmem:[%s994 + $0x10] sm:$0xff]
      %v998 = vld [vmem:[%s994 + $0x18] sm:$0xff]
      %v999 = vld [vmem:[%s994 + $0x20] sm:$0xff]
      %v1000 = vld [vmem:[%s994 + $0x28] sm:$0xff]
      %v1001 = vld [vmem:[%s994 + $0x30] sm:$0xff]
      %v1002 = vld [vmem:[%s994 + $0x38] sm:$0xff]
      %v1003 = vld [vmem:[%s994 + $0x40] sm:$0xff]
      %v1004 = vld [vmem:[%s994 + $0x48] sm:$0xff]
      %v1005 = vld [vmem:[%s994 + $0x50] sm:$0xff]
      %v1006 = vld [vmem:[%s994 + $0x58] sm:$0xff]
      %v1007 = vld [vmem:[%s994 + $0x60] sm:$0xff]
      %v1008 = vld [vmem:[%s994 + $0x68] sm:$0xff]
      %v1009 = vld [vmem:[%s994 + $0x70] sm:$0xff]
      %v1010 = vld [vmem:[%s994 + $0x78] sm:$0xff]
      %v1011 = vld [vmem:[%s994 + $0x80] sm:$0xff]
      %v1012 = vld [vmem:[%s994 + $0x88] sm:$0xff]
      %v1013 = vld [vmem:[%s994 + $0x90] sm:$0xff]
      %v1014 = vld [vmem:[%s994 + $0x98] sm:$0xff]
      %v1015 = vld [vmem:[%s994 + $0xa0] sm:$0xff]
      %v1016 = vld [vmem:[%s994 + $0xa8] sm:$0xff]
      %v1017 = vld [vmem:[%s994 + $0xb0] sm:$0xff]
      %v1018 = vld [vmem:[%s994 + $0xb8] sm:$0xff]
      %v1019 = vld [vmem:[%s994 + $0xc0] sm:$0xf]
      %v1021 = vsel %vm388, %v1019, 0
      %1023 = vmatpush.msra.mxu0 %v1010
      %1024 = vmatpush.msra.mxu0 %v1009
      %1025 = vmatpush.msra.mxu0 %v1008
      %1026 = vmatpush.msra.mxu0 %v1007
      %1027 = vmatpush.msra.mxu0 %v1006
      %1028 = vmatpush.msra.mxu0 %v1005
      %1029 = vmatpush.msra.mxu0 %v1004
      %1030 = vmatpush.msra.mxu0 %v1003
      %1031 = vmatpush.msra.mxu0 %v1002
      %1032 = vmatpush.msra.mxu0 %v1001
      %1033 = vmatpush.msra.mxu0 %v1000
      %1034 = vmatpush.msra.mxu0 %v999
      %1035 = vmatpush.msra.mxu0 %v998
      %1036 = vmatpush.msra.mxu0 %v997
      %1037 = vmatpush.msra.mxu0 %v996
      %1038 = vmatpush.msra.mxu0 %v995
      %1039 = vmatmul.f32.gmra.mxu0 %v357
      %v1040 = vpop.f32.mrf.mxu0
      %v1041 = vadd.f32 0.0, %v1040
      %1042 = vdwg.mxu0
      %1043 = vmatpush.msra.mxu0 0.0
      %1044 = vmatpush.msra.mxu0 0.0
      %1045 = vmatpush.msra.mxu0 0.0
      %1046 = vmatpush.msra.mxu0 0.0
      %1047 = vmatpush.msra.mxu0 0.0
      %1048 = vmatpush.msra.mxu0 0.0
      %1049 = vmatpush.msra.mxu0 0.0
      %1050 = vmatpush.msra.mxu0 %v1021
      %1051 = vmatpush.msra.mxu0 %v1018
      %1052 = vmatpush.msra.mxu0 %v1017
      %1053 = vmatpush.msra.mxu0 %v1016
      %1054 = vmatpush.msra.mxu0 %v1015
      %1055 = vmatpush.msra.mxu0 %v1014
      %1056 = vmatpush.msra.mxu0 %v1013
      %1057 = vmatpush.msra.mxu0 %v1012
      %1058 = vmatpush.msra.mxu0 %v1011
      %1059 = vmatmul.f32.gmra.mxu0 %v386
      %v1060 = vpop.f32.mrf.mxu0
      %v1061 = vadd.f32 %v1041, %v1060
      %1062 = vdwg.mxu0
      %1063 = vst.msk [vmem:[#allocation2 + $0x48] sm:$0xff] %vm432, %v1061
      %s1064 = scalar_lea.vmem %s3, 2000
      %v1065 = vld [vmem:[%s1064] sm:$0xff]
      %v1066 = vld [vmem:[%s1064 + $0x8] sm:$0xff]
      %v1067 = vld [vmem:[%s1064 + $0x10] sm:$0xff]
      %v1068 = vld [vmem:[%s1064 + $0x18] sm:$0xff]
      %v1069 = vld [vmem:[%s1064 + $0x20] sm:$0xff]
      %v1070 = vld [vmem:[%s1064 + $0x28] sm:$0xff]
      %v1071 = vld [vmem:[%s1064 + $0x30] sm:$0xff]
      %v1072 = vld [vmem:[%s1064 + $0x38] sm:$0xff]
      %v1073 = vld [vmem:[%s1064 + $0x40] sm:$0xff]
      %v1074 = vld [vmem:[%s1064 + $0x48] sm:$0xff]
      %v1075 = vld [vmem:[%s1064 + $0x50] sm:$0xff]
      %v1076 = vld [vmem:[%s1064 + $0x58] sm:$0xff]
      %v1077 = vld [vmem:[%s1064 + $0x60] sm:$0xff]
      %v1078 = vld [vmem:[%s1064 + $0x68] sm:$0xff]
      %v1079 = vld [vmem:[%s1064 + $0x70] sm:$0xff]
      %v1080 = vld [vmem:[%s1064 + $0x78] sm:$0xff]
      %v1081 = vld [vmem:[%s1064 + $0x80] sm:$0xff]
      %v1082 = vld [vmem:[%s1064 + $0x88] sm:$0xff]
      %v1083 = vld [vmem:[%s1064 + $0x90] sm:$0xff]
      %v1084 = vld [vmem:[%s1064 + $0x98] sm:$0xff]
      %v1085 = vld [vmem:[%s1064 + $0xa0] sm:$0xff]
      %v1086 = vld [vmem:[%s1064 + $0xa8] sm:$0xff]
      %v1087 = vld [vmem:[%s1064 + $0xb0] sm:$0xff]
      %v1088 = vld [vmem:[%s1064 + $0xb8] sm:$0xff]
      %v1089 = vld [vmem:[%s1064 + $0xc0] sm:$0xf]
      %v1091 = vsel %vm388, %v1089, 0
      %1093 = vmatpush.msra.mxu0 %v1080
      %1094 = vmatpush.msra.mxu0 %v1079
      %1095 = vmatpush.msra.mxu0 %v1078
      %1096 = vmatpush.msra.mxu0 %v1077
      %1097 = vmatpush.msra.mxu0 %v1076
      %1098 = vmatpush.msra.mxu0 %v1075
      %1099 = vmatpush.msra.mxu0 %v1074
      %1100 = vmatpush.msra.mxu0 %v1073
      %1101 = vmatpush.msra.mxu0 %v1072
      %1102 = vmatpush.msra.mxu0 %v1071
      %1103 = vmatpush.msra.mxu0 %v1070
      %1104 = vmatpush.msra.mxu0 %v1069
      %1105 = vmatpush.msra.mxu0 %v1068
      %1106 = vmatpush.msra.mxu0 %v1067
      %1107 = vmatpush.msra.mxu0 %v1066
      %1108 = vmatpush.msra.mxu0 %v1065
      %1109 = vmatmul.f32.gmra.mxu0 %v357
      %v1110 = vpop.f32.mrf.mxu0
      %v1111 = vadd.f32 0.0, %v1110
      %1112 = vdwg.mxu0
      %1113 = vmatpush.msra.mxu0 0.0
      %1114 = vmatpush.msra.mxu0 0.0
      %1115 = vmatpush.msra.mxu0 0.0
      %1116 = vmatpush.msra.mxu0 0.0
      %1117 = vmatpush.msra.mxu0 0.0
      %1118 = vmatpush.msra.mxu0 0.0
      %1119 = vmatpush.msra.mxu0 0.0
      %1120 = vmatpush.msra.mxu0 %v1091
      %1121 = vmatpush.msra.mxu0 %v1088
      %1122 = vmatpush.msra.mxu0 %v1087
      %1123 = vmatpush.msra.mxu0 %v1086
      %1124 = vmatpush.msra.mxu0 %v1085
      %1125 = vmatpush.msra.mxu0 %v1084
      %1126 = vmatpush.msra.mxu0 %v1083
      %1127 = vmatpush.msra.mxu0 %v1082
      %1128 = vmatpush.msra.mxu0 %v1081
      %1129 = vmatmul.f32.gmra.mxu0 %v386
      %v1130 = vpop.f32.mrf.mxu0
      %v1131 = vadd.f32 %v1111, %v1130
      %1132 = vdwg.mxu0
      %1133 = vst.msk [vmem:[#allocation2 + $0x50] sm:$0xff] %vm432, %v1131
      %s1134 = scalar_lea.vmem %s3, 2200
      %v1135 = vld [vmem:[%s1134] sm:$0xff]
      %v1136 = vld [vmem:[%s1134 + $0x8] sm:$0xff]
      %v1137 = vld [vmem:[%s1134 + $0x10] sm:$0xff]
      %v1138 = vld [vmem:[%s1134 + $0x18] sm:$0xff]
      %v1139 = vld [vmem:[%s1134 + $0x20] sm:$0xff]
      %v1140 = vld [vmem:[%s1134 + $0x28] sm:$0xff]
      %v1141 = vld [vmem:[%s1134 + $0x30] sm:$0xff]
      %v1142 = vld [vmem:[%s1134 + $0x38] sm:$0xff]
      %v1143 = vld [vmem:[%s1134 + $0x40] sm:$0xff]
      %v1144 = vld [vmem:[%s1134 + $0x48] sm:$0xff]
      %v1145 = vld [vmem:[%s1134 + $0x50] sm:$0xff]
      %v1146 = vld [vmem:[%s1134 + $0x58] sm:$0xff]
      %v1147 = vld [vmem:[%s1134 + $0x60] sm:$0xff]
      %v1148 = vld [vmem:[%s1134 + $0x68] sm:$0xff]
      %v1149 = vld [vmem:[%s1134 + $0x70] sm:$0xff]
      %v1150 = vld [vmem:[%s1134 + $0x78] sm:$0xff]
      %v1151 = vld [vmem:[%s1134 + $0x80] sm:$0xff]
      %v1152 = vld [vmem:[%s1134 + $0x88] sm:$0xff]
      %v1153 = vld [vmem:[%s1134 + $0x90] sm:$0xff]
      %v1154 = vld [vmem:[%s1134 + $0x98] sm:$0xff]
      %v1155 = vld [vmem:[%s1134 + $0xa0] sm:$0xff]
      %v1156 = vld [vmem:[%s1134 + $0xa8] sm:$0xff]
      %v1157 = vld [vmem:[%s1134 + $0xb0] sm:$0xff]
      %v1158 = vld [vmem:[%s1134 + $0xb8] sm:$0xff]
      %v1159 = vld [vmem:[%s1134 + $0xc0] sm:$0xf]
      %v1161 = vsel %vm388, %v1159, 0
      %1163 = vmatpush.msra.mxu0 %v1150
      %1164 = vmatpush.msra.mxu0 %v1149
      %1165 = vmatpush.msra.mxu0 %v1148
      %1166 = vmatpush.msra.mxu0 %v1147
      %1167 = vmatpush.msra.mxu0 %v1146
      %1168 = vmatpush.msra.mxu0 %v1145
      %1169 = vmatpush.msra.mxu0 %v1144
      %1170 = vmatpush.msra.mxu0 %v1143
      %1171 = vmatpush.msra.mxu0 %v1142
      %1172 = vmatpush.msra.mxu0 %v1141
      %1173 = vmatpush.msra.mxu0 %v1140
      %1174 = vmatpush.msra.mxu0 %v1139
      %1175 = vmatpush.msra.mxu0 %v1138
      %1176 = vmatpush.msra.mxu0 %v1137
      %1177 = vmatpush.msra.mxu0 %v1136
      %1178 = vmatpush.msra.mxu0 %v1135
      %1179 = vmatmul.f32.gmra.mxu0 %v357
      %v1180 = vpop.f32.mrf.mxu0
      %v1181 = vadd.f32 0.0, %v1180
      %1182 = vdwg.mxu0
      %1183 = vmatpush.msra.mxu0 0.0
      %1184 = vmatpush.msra.mxu0 0.0
      %1185 = vmatpush.msra.mxu0 0.0
      %1186 = vmatpush.msra.mxu0 0.0
      %1187 = vmatpush.msra.mxu0 0.0
      %1188 = vmatpush.msra.mxu0 0.0
      %1189 = vmatpush.msra.mxu0 0.0
      %1190 = vmatpush.msra.mxu0 %v1161
      %1191 = vmatpush.msra.mxu0 %v1158
      %1192 = vmatpush.msra.mxu0 %v1157
      %1193 = vmatpush.msra.mxu0 %v1156
      %1194 = vmatpush.msra.mxu0 %v1155
      %1195 = vmatpush.msra.mxu0 %v1154
      %1196 = vmatpush.msra.mxu0 %v1153
      %1197 = vmatpush.msra.mxu0 %v1152
      %1198 = vmatpush.msra.mxu0 %v1151
      %1199 = vmatmul.f32.gmra.mxu0 %v386
      %v1200 = vpop.f32.mrf.mxu0
      %v1201 = vadd.f32 %v1181, %v1200
      %1202 = vdwg.mxu0
      %1203 = vst.msk [vmem:[#allocation2 + $0x58] sm:$0xff] %vm432, %v1201
      %s1204 = scalar_lea.vmem %s3, 2400
      %v1205 = vld [vmem:[%s1204] sm:$0xff]
      %v1206 = vld [vmem:[%s1204 + $0x8] sm:$0xff]
      %v1207 = vld [vmem:[%s1204 + $0x10] sm:$0xff]
      %v1208 = vld [vmem:[%s1204 + $0x18] sm:$0xff]
      %v1209 = vld [vmem:[%s1204 + $0x20] sm:$0xff]
      %v1210 = vld [vmem:[%s1204 + $0x28] sm:$0xff]
      %v1211 = vld [vmem:[%s1204 + $0x30] sm:$0xff]
      %v1212 = vld [vmem:[%s1204 + $0x38] sm:$0xff]
      %v1213 = vld [vmem:[%s1204 + $0x40] sm:$0xff]
      %v1214 = vld [vmem:[%s1204 + $0x48] sm:$0xff]
      %v1215 = vld [vmem:[%s1204 + $0x50] sm:$0xff]
      %v1216 = vld [vmem:[%s1204 + $0x58] sm:$0xff]
      %v1217 = vld [vmem:[%s1204 + $0x60] sm:$0xff]
      %v1218 = vld [vmem:[%s1204 + $0x68] sm:$0xff]
      %v1219 = vld [vmem:[%s1204 + $0x70] sm:$0xff]
      %v1220 = vld [vmem:[%s1204 + $0x78] sm:$0xff]
      %v1221 = vld [vmem:[%s1204 + $0x80] sm:$0xff]
      %v1222 = vld [vmem:[%s1204 + $0x88] sm:$0xff]
      %v1223 = vld [vmem:[%s1204 + $0x90] sm:$0xff]
      %v1224 = vld [vmem:[%s1204 + $0x98] sm:$0xff]
      %v1225 = vld [vmem:[%s1204 + $0xa0] sm:$0xff]
      %v1226 = vld [vmem:[%s1204 + $0xa8] sm:$0xff]
      %v1227 = vld [vmem:[%s1204 + $0xb0] sm:$0xff]
      %v1228 = vld [vmem:[%s1204 + $0xb8] sm:$0xff]
      %v1229 = vld [vmem:[%s1204 + $0xc0] sm:$0xf]
      %v1231 = vsel %vm388, %v1229, 0
      %1233 = vmatpush.msra.mxu0 %v1220
      %1234 = vmatpush.msra.mxu0 %v1219
      %1235 = vmatpush.msra.mxu0 %v1218
      %1236 = vmatpush.msra.mxu0 %v1217
      %1237 = vmatpush.msra.mxu0 %v1216
      %1238 = vmatpush.msra.mxu0 %v1215
      %1239 = vmatpush.msra.mxu0 %v1214
      %1240 = vmatpush.msra.mxu0 %v1213
      %1241 = vmatpush.msra.mxu0 %v1212
      %1242 = vmatpush.msra.mxu0 %v1211
      %1243 = vmatpush.msra.mxu0 %v1210
      %1244 = vmatpush.msra.mxu0 %v1209
      %1245 = vmatpush.msra.mxu0 %v1208
      %1246 = vmatpush.msra.mxu0 %v1207
      %1247 = vmatpush.msra.mxu0 %v1206
      %1248 = vmatpush.msra.mxu0 %v1205
      %1249 = vmatmul.f32.gmra.mxu0 %v357
      %v1250 = vpop.f32.mrf.mxu0
      %v1251 = vadd.f32 0.0, %v1250
      %1252 = vdwg.mxu0
      %1253 = vmatpush.msra.mxu0 0.0
      %1254 = vmatpush.msra.mxu0 0.0
      %1255 = vmatpush.msra.mxu0 0.0
      %1256 = vmatpush.msra.mxu0 0.0
      %1257 = vmatpush.msra.mxu0 0.0
      %1258 = vmatpush.msra.mxu0 0.0
      %1259 = vmatpush.msra.mxu0 0.0
      %1260 = vmatpush.msra.mxu0 %v1231
      %1261 = vmatpush.msra.mxu0 %v1228
      %1262 = vmatpush.msra.mxu0 %v1227
      %1263 = vmatpush.msra.mxu0 %v1226
      %1264 = vmatpush.msra.mxu0 %v1225
      %1265 = vmatpush.msra.mxu0 %v1224
      %1266 = vmatpush.msra.mxu0 %v1223
      %1267 = vmatpush.msra.mxu0 %v1222
      %1268 = vmatpush.msra.mxu0 %v1221
      %1269 = vmatmul.f32.gmra.mxu0 %v386
      %v1270 = vpop.f32.mrf.mxu0
      %v1271 = vadd.f32 %v1251, %v1270
      %1272 = vdwg.mxu0
      %1273 = vst.msk [vmem:[#allocation2 + $0x60] sm:$0xff] %vm432, %v1271
      %s1274 = scalar_lea.vmem %s3, 2600
      %v1275 = vld [vmem:[%s1274] sm:$0xff]
      %v1276 = vld [vmem:[%s1274 + $0x8] sm:$0xff]
      %v1277 = vld [vmem:[%s1274 + $0x10] sm:$0xff]
      %v1278 = vld [vmem:[%s1274 + $0x18] sm:$0xff]
      %v1279 = vld [vmem:[%s1274 + $0x20] sm:$0xff]
      %v1280 = vld [vmem:[%s1274 + $0x28] sm:$0xff]
      %v1281 = vld [vmem:[%s1274 + $0x30] sm:$0xff]
      %v1282 = vld [vmem:[%s1274 + $0x38] sm:$0xff]
      %v1283 = vld [vmem:[%s1274 + $0x40] sm:$0xff]
      %v1284 = vld [vmem:[%s1274 + $0x48] sm:$0xff]
      %v1285 = vld [vmem:[%s1274 + $0x50] sm:$0xff]
      %v1286 = vld [vmem:[%s1274 + $0x58] sm:$0xff]
      %v1287 = vld [vmem:[%s1274 + $0x60] sm:$0xff]
      %v1288 = vld [vmem:[%s1274 + $0x68] sm:$0xff]
      %v1289 = vld [vmem:[%s1274 + $0x70] sm:$0xff]
      %v1290 = vld [vmem:[%s1274 + $0x78] sm:$0xff]
      %v1291 = vld [vmem:[%s1274 + $0x80] sm:$0xff]
      %v1292 = vld [vmem:[%s1274 + $0x88] sm:$0xff]
      %v1293 = vld [vmem:[%s1274 + $0x90] sm:$0xff]
      %v1294 = vld [vmem:[%s1274 + $0x98] sm:$0xff]
      %v1295 = vld [vmem:[%s1274 + $0xa0] sm:$0xff]
      %v1296 = vld [vmem:[%s1274 + $0xa8] sm:$0xff]
      %v1297 = vld [vmem:[%s1274 + $0xb0] sm:$0xff]
      %v1298 = vld [vmem:[%s1274 + $0xb8] sm:$0xff]
      %v1299 = vld [vmem:[%s1274 + $0xc0] sm:$0xf]
      %v1301 = vsel %vm388, %v1299, 0
      %1303 = vmatpush.msra.mxu0 %v1290
      %1304 = vmatpush.msra.mxu0 %v1289
      %1305 = vmatpush.msra.mxu0 %v1288
      %1306 = vmatpush.msra.mxu0 %v1287
      %1307 = vmatpush.msra.mxu0 %v1286
      %1308 = vmatpush.msra.mxu0 %v1285
      %1309 = vmatpush.msra.mxu0 %v1284
      %1310 = vmatpush.msra.mxu0 %v1283
      %1311 = vmatpush.msra.mxu0 %v1282
      %1312 = vmatpush.msra.mxu0 %v1281
      %1313 = vmatpush.msra.mxu0 %v1280
      %1314 = vmatpush.msra.mxu0 %v1279
      %1315 = vmatpush.msra.mxu0 %v1278
      %1316 = vmatpush.msra.mxu0 %v1277
      %1317 = vmatpush.msra.mxu0 %v1276
      %1318 = vmatpush.msra.mxu0 %v1275
      %1319 = vmatmul.f32.gmra.mxu0 %v357
      %v1320 = vpop.f32.mrf.mxu0
      %v1321 = vadd.f32 0.0, %v1320
      %1322 = vdwg.mxu0
      %1323 = vmatpush.msra.mxu0 0.0
      %1324 = vmatpush.msra.mxu0 0.0
      %1325 = vmatpush.msra.mxu0 0.0
      %1326 = vmatpush.msra.mxu0 0.0
      %1327 = vmatpush.msra.mxu0 0.0
      %1328 = vmatpush.msra.mxu0 0.0
      %1329 = vmatpush.msra.mxu0 0.0
      %1330 = vmatpush.msra.mxu0 %v1301
      %1331 = vmatpush.msra.mxu0 %v1298
      %1332 = vmatpush.msra.mxu0 %v1297
      %1333 = vmatpush.msra.mxu0 %v1296
      %1334 = vmatpush.msra.mxu0 %v1295
      %1335 = vmatpush.msra.mxu0 %v1294
      %1336 = vmatpush.msra.mxu0 %v1293
      %1337 = vmatpush.msra.mxu0 %v1292
      %1338 = vmatpush.msra.mxu0 %v1291
      %1339 = vmatmul.f32.gmra.mxu0 %v386
      %v1340 = vpop.f32.mrf.mxu0
      %v1341 = vadd.f32 %v1321, %v1340
      %1342 = vdwg.mxu0
      %1343 = vst.msk [vmem:[#allocation2 + $0x68] sm:$0xff] %vm432, %v1341
      %s1344 = scalar_lea.vmem %s3, 2800
      %v1345 = vld [vmem:[%s1344] sm:$0xff]
      %v1346 = vld [vmem:[%s1344 + $0x8] sm:$0xff]
      %v1347 = vld [vmem:[%s1344 + $0x10] sm:$0xff]
      %v1348 = vld [vmem:[%s1344 + $0x18] sm:$0xff]
      %v1349 = vld [vmem:[%s1344 + $0x20] sm:$0xff]
      %v1350 = vld [vmem:[%s1344 + $0x28] sm:$0xff]
      %v1351 = vld [vmem:[%s1344 + $0x30] sm:$0xff]
      %v1352 = vld [vmem:[%s1344 + $0x38] sm:$0xff]
      %v1353 = vld [vmem:[%s1344 + $0x40] sm:$0xff]
      %v1354 = vld [vmem:[%s1344 + $0x48] sm:$0xff]
      %v1355 = vld [vmem:[%s1344 + $0x50] sm:$0xff]
      %v1356 = vld [vmem:[%s1344 + $0x58] sm:$0xff]
      %v1357 = vld [vmem:[%s1344 + $0x60] sm:$0xff]
      %v1358 = vld [vmem:[%s1344 + $0x68] sm:$0xff]
      %v1359 = vld [vmem:[%s1344 + $0x70] sm:$0xff]
      %v1360 = vld [vmem:[%s1344 + $0x78] sm:$0xff]
      %v1361 = vld [vmem:[%s1344 + $0x80] sm:$0xff]
      %v1362 = vld [vmem:[%s1344 + $0x88] sm:$0xff]
      %v1363 = vld [vmem:[%s1344 + $0x90] sm:$0xff]
      %v1364 = vld [vmem:[%s1344 + $0x98] sm:$0xff]
      %v1365 = vld [vmem:[%s1344 + $0xa0] sm:$0xff]
      %v1366 = vld [vmem:[%s1344 + $0xa8] sm:$0xff]
      %v1367 = vld [vmem:[%s1344 + $0xb0] sm:$0xff]
      %v1368 = vld [vmem:[%s1344 + $0xb8] sm:$0xff]
      %v1369 = vld [vmem:[%s1344 + $0xc0] sm:$0xf]
      %v1371 = vsel %vm388, %v1369, 0
      %1373 = vmatpush.msra.mxu0 %v1360
      %1374 = vmatpush.msra.mxu0 %v1359
      %1375 = vmatpush.msra.mxu0 %v1358
      %1376 = vmatpush.msra.mxu0 %v1357
      %1377 = vmatpush.msra.mxu0 %v1356
      %1378 = vmatpush.msra.mxu0 %v1355
      %1379 = vmatpush.msra.mxu0 %v1354
      %1380 = vmatpush.msra.mxu0 %v1353
      %1381 = vmatpush.msra.mxu0 %v1352
      %1382 = vmatpush.msra.mxu0 %v1351
      %1383 = vmatpush.msra.mxu0 %v1350
      %1384 = vmatpush.msra.mxu0 %v1349
      %1385 = vmatpush.msra.mxu0 %v1348
      %1386 = vmatpush.msra.mxu0 %v1347
      %1387 = vmatpush.msra.mxu0 %v1346
      %1388 = vmatpush.msra.mxu0 %v1345
      %1389 = vmatmul.f32.gmra.mxu0 %v357
      %v1390 = vpop.f32.mrf.mxu0
      %v1391 = vadd.f32 0.0, %v1390
      %1392 = vdwg.mxu0
      %1393 = vmatpush.msra.mxu0 0.0
      %1394 = vmatpush.msra.mxu0 0.0
      %1395 = vmatpush.msra.mxu0 0.0
      %1396 = vmatpush.msra.mxu0 0.0
      %1397 = vmatpush.msra.mxu0 0.0
      %1398 = vmatpush.msra.mxu0 0.0
      %1399 = vmatpush.msra.mxu0 0.0
      %1400 = vmatpush.msra.mxu0 %v1371
      %1401 = vmatpush.msra.mxu0 %v1368
      %1402 = vmatpush.msra.mxu0 %v1367
      %1403 = vmatpush.msra.mxu0 %v1366
      %1404 = vmatpush.msra.mxu0 %v1365
      %1405 = vmatpush.msra.mxu0 %v1364
      %1406 = vmatpush.msra.mxu0 %v1363
      %1407 = vmatpush.msra.mxu0 %v1362
      %1408 = vmatpush.msra.mxu0 %v1361
      %1409 = vmatmul.f32.gmra.mxu0 %v386
      %v1410 = vpop.f32.mrf.mxu0
      %v1411 = vadd.f32 %v1391, %v1410
      %1412 = vdwg.mxu0
      %1413 = vst.msk [vmem:[#allocation2 + $0x70] sm:$0xff] %vm432, %v1411
      %s1414 = scalar_lea.vmem %s3, 3000
      %v1415 = vld [vmem:[%s1414] sm:$0xff]
      %v1416 = vld [vmem:[%s1414 + $0x8] sm:$0xff]
      %v1417 = vld [vmem:[%s1414 + $0x10] sm:$0xff]
      %v1418 = vld [vmem:[%s1414 + $0x18] sm:$0xff]
      %v1419 = vld [vmem:[%s1414 + $0x20] sm:$0xff]
      %v1420 = vld [vmem:[%s1414 + $0x28] sm:$0xff]
      %v1421 = vld [vmem:[%s1414 + $0x30] sm:$0xff]
      %v1422 = vld [vmem:[%s1414 + $0x38] sm:$0xff]
      %v1423 = vld [vmem:[%s1414 + $0x40] sm:$0xff]
      %v1424 = vld [vmem:[%s1414 + $0x48] sm:$0xff]
      %v1425 = vld [vmem:[%s1414 + $0x50] sm:$0xff]
      %v1426 = vld [vmem:[%s1414 + $0x58] sm:$0xff]
      %v1427 = vld [vmem:[%s1414 + $0x60] sm:$0xff]
      %v1428 = vld [vmem:[%s1414 + $0x68] sm:$0xff]
      %v1429 = vld [vmem:[%s1414 + $0x70] sm:$0xff]
      %v1430 = vld [vmem:[%s1414 + $0x78] sm:$0xff]
      %v1431 = vld [vmem:[%s1414 + $0x80] sm:$0xff]
      %v1432 = vld [vmem:[%s1414 + $0x88] sm:$0xff]
      %v1433 = vld [vmem:[%s1414 + $0x90] sm:$0xff]
      %v1434 = vld [vmem:[%s1414 + $0x98] sm:$0xff]
      %v1435 = vld [vmem:[%s1414 + $0xa0] sm:$0xff]
      %v1436 = vld [vmem:[%s1414 + $0xa8] sm:$0xff]
      %v1437 = vld [vmem:[%s1414 + $0xb0] sm:$0xff]
      %v1438 = vld [vmem:[%s1414 + $0xb8] sm:$0xff]
      %v1439 = vld [vmem:[%s1414 + $0xc0] sm:$0xf]
      %v1441 = vsel %vm388, %v1439, 0
      %1443 = vmatpush.msra.mxu0 %v1430
      %1444 = vmatpush.msra.mxu0 %v1429
      %1445 = vmatpush.msra.mxu0 %v1428
      %1446 = vmatpush.msra.mxu0 %v1427
      %1447 = vmatpush.msra.mxu0 %v1426
      %1448 = vmatpush.msra.mxu0 %v1425
      %1449 = vmatpush.msra.mxu0 %v1424
      %1450 = vmatpush.msra.mxu0 %v1423
      %1451 = vmatpush.msra.mxu0 %v1422
      %1452 = vmatpush.msra.mxu0 %v1421
      %1453 = vmatpush.msra.mxu0 %v1420
      %1454 = vmatpush.msra.mxu0 %v1419
      %1455 = vmatpush.msra.mxu0 %v1418
      %1456 = vmatpush.msra.mxu0 %v1417
      %1457 = vmatpush.msra.mxu0 %v1416
      %1458 = vmatpush.msra.mxu0 %v1415
      %1459 = vmatmul.f32.gmra.mxu0 %v357
      %v1460 = vpop.f32.mrf.mxu0
      %v1461 = vadd.f32 0.0, %v1460
      %1462 = vdwg.mxu0
      %1463 = vmatpush.msra.mxu0 0.0
      %1464 = vmatpush.msra.mxu0 0.0
      %1465 = vmatpush.msra.mxu0 0.0
      %1466 = vmatpush.msra.mxu0 0.0
      %1467 = vmatpush.msra.mxu0 0.0
      %1468 = vmatpush.msra.mxu0 0.0
      %1469 = vmatpush.msra.mxu0 0.0
      %1470 = vmatpush.msra.mxu0 %v1441
      %1471 = vmatpush.msra.mxu0 %v1438
      %1472 = vmatpush.msra.mxu0 %v1437
      %1473 = vmatpush.msra.mxu0 %v1436
      %1474 = vmatpush.msra.mxu0 %v1435
      %1475 = vmatpush.msra.mxu0 %v1434
      %1476 = vmatpush.msra.mxu0 %v1433
      %1477 = vmatpush.msra.mxu0 %v1432
      %1478 = vmatpush.msra.mxu0 %v1431
      %1479 = vmatmul.f32.gmra.mxu0 %v386
      %v1480 = vpop.f32.mrf.mxu0
      %v1481 = vadd.f32 %v1461, %v1480
      %1482 = vdwg.mxu0
      %1483 = vst.msk [vmem:[#allocation2 + $0x78] sm:$0xff] %vm432, %v1481
      %v1484 = vld [vmem:[%s4] sm:$0xff]
      %v1485 = vld [vmem:[%s4 + $0x8] sm:$0xff]
      %v1486 = vld [vmem:[#allocation2] sm:$0xff]
      %v1487 = vld [vmem:[#allocation2 + $0x8] sm:$0xff]
      %v1488 = vld [vmem:[#allocation2 + $0x10] sm:$0xff]
      %v1489 = vld [vmem:[#allocation2 + $0x18] sm:$0xff]
      %v1490 = vld [vmem:[#allocation2 + $0x20] sm:$0xff]
      %v1491 = vld [vmem:[#allocation2 + $0x28] sm:$0xff]
      %v1492 = vld [vmem:[#allocation2 + $0x30] sm:$0xff]
      %v1493 = vld [vmem:[#allocation2 + $0x38] sm:$0xff]
      %v1494 = vld [vmem:[#allocation2 + $0x40] sm:$0xff]
      %v1495 = vld [vmem:[#allocation2 + $0x48] sm:$0xff]
      %v1496 = vld [vmem:[#allocation2 + $0x50] sm:$0xff]
      %v1497 = vld [vmem:[#allocation2 + $0x58] sm:$0xff]
      %v1498 = vld [vmem:[#allocation2 + $0x60] sm:$0xff]
      %v1499 = vld [vmem:[#allocation2 + $0x68] sm:$0xff]
      %v1500 = vld [vmem:[#allocation2 + $0x70] sm:$0xff]
      %v1501 = vld [vmem:[#allocation2 + $0x78] sm:$0xff]
      %v1502 = vld [vmem:[%s5] sm:$0xff]
      %v1503 = vld [vmem:[%s5 + $0x8] sm:$0xff]
      %1505 = vset.pattern.permute.xlu0 0
      %1506 = vperm.xlu0 %1505, %v1502
      %v1507 = vpop.permute.xlu0 %1506
      %1510 = vset.pattern.permute.xlu0 0
      %1511 = vperm.xlu0 %1510, %v1503
      %v1512 = vpop.permute.xlu0 %1511
      %1514 = vmatpush.msra.mxu0 %v1501
      %1515 = vmatpush.msra.mxu0 %v1500
      %1516 = vmatpush.msra.mxu0 %v1499
      %1517 = vmatpush.msra.mxu0 %v1498
      %1518 = vmatpush.msra.mxu0 %v1497
      %1519 = vmatpush.msra.mxu0 %v1496
      %1520 = vmatpush.msra.mxu0 %v1495
      %1521 = vmatpush.msra.mxu0 %v1494
      %1522 = vmatpush.msra.mxu0 %v1493
      %1523 = vmatpush.msra.mxu0 %v1492
      %1524 = vmatpush.msra.mxu0 %v1491
      %1525 = vmatpush.msra.mxu0 %v1490
      %1526 = vmatpush.msra.mxu0 %v1489
      %1527 = vmatpush.msra.mxu0 %v1488
      %1528 = vmatpush.msra.mxu0 %v1487
      %1529 = vmatpush.msra.mxu0 %v1486
      %1530 = vmatmul.f32.gmra.mxu0 %v1484
      %v1531 = vpop.f32.mrf.mxu0
      %v1532 = vadd.f32 %v1507, %v1531
      %1533 = vmatmul.f32.gmra.mxu0 %v1485
      %v1534 = vpop.f32.mrf.mxu0
      %v1535 = vadd.f32 %v1512, %v1534
      %1536 = vdwg.mxu0
      %v1537 = vmax.f32 %v1532, 0.0
      %v1538 = vmax.f32 %v1535, 0.0
      %v1539 = vld [vmem:[%s7] sm:$0x1]
      %v1540 = vld [vmem:[%s6] sm:$0xff]
      %v1541 = vld [vmem:[%s6 + $0x8] sm:$0xff]
      %v1542 = vld [vmem:[%s6 + $0x10] sm:$0xff]
      %v1543 = vld [vmem:[%s6 + $0x18] sm:$0xff]
      %v1544 = vld [vmem:[%s6 + $0x20] sm:$0xff]
      %v1545 = vld [vmem:[%s6 + $0x28] sm:$0xff]
      %v1546 = vld [vmem:[%s6 + $0x30] sm:$0x1]
      %v1548 = vsel %vm432, %v1537, 0
      %vm1550 = vcmask 1040384
      %v1552 = vsel %vm1550, %v1546, 0
      %1554 = vmatpush.msra.mxu0 0.0
      %1555 = vmatpush.msra.mxu0 0.0
      %1556 = vmatpush.msra.mxu0 0.0
      %1557 = vmatpush.msra.mxu0 0.0
      %1558 = vmatpush.msra.mxu0 0.0
      %1559 = vmatpush.msra.mxu0 0.0
      %1560 = vmatpush.msra.mxu0 0.0
      %1561 = vmatpush.msra.mxu0 0.0
      %1562 = vmatpush.msra.mxu0 0.0
      %1563 = vmatpush.msra.mxu0 %v1552
      %1564 = vmatpush.msra.mxu0 %v1545
      %1565 = vmatpush.msra.mxu0 %v1544
      %1566 = vmatpush.msra.mxu0 %v1543
      %1567 = vmatpush.msra.mxu0 %v1542
      %1568 = vmatpush.msra.mxu0 %v1541
      %1569 = vmatpush.msra.mxu0 %v1540
      %1570 = vmatmul.f32.gmra.mxu0 %v1548
      %v1571 = vpop.f32.mrf.mxu0
      %v1572 = vadd.f32 0.0, %v1571
      %1573 = vdwg.mxu0
      %v1574 = vadd.f32 %v1539, %v1572
      %s1575 = scalar_lea.vmem %s6, 56
      %v1576 = vld [vmem:[%s1575] sm:$0xff]
      %v1577 = vld [vmem:[%s1575 + $0x8] sm:$0xff]
      %v1578 = vld [vmem:[%s1575 + $0x10] sm:$0xff]
      %v1579 = vld [vmem:[%s1575 + $0x18] sm:$0xff]
      %v1580 = vld [vmem:[%s1575 + $0x20] sm:$0xff]
      %v1581 = vld [vmem:[%s1575 + $0x28] sm:$0xff]
      %v1582 = vld [vmem:[%s1575 + $0x30] sm:$0x1]
      %v1583 = vrot.slane %v1537, 1
      %v1584 = vsel %vm432, %v1583, 0
      %v1587 = vsel %vm1550, %v1582, 0
      %1589 = vmatpush.msra.mxu0 0.0
      %1590 = vmatpush.msra.mxu0 0.0
      %1591 = vmatpush.msra.mxu0 0.0
      %1592 = vmatpush.msra.mxu0 0.0
      %1593 = vmatpush.msra.mxu0 0.0
      %1594 = vmatpush.msra.mxu0 0.0
      %1595 = vmatpush.msra.mxu0 0.0
      %1596 = vmatpush.msra.mxu0 0.0
      %1597 = vmatpush.msra.mxu0 0.0
      %1598 = vmatpush.msra.mxu0 %v1587
      %1599 = vmatpush.msra.mxu0 %v1581
      %1600 = vmatpush.msra.mxu0 %v1580
      %1601 = vmatpush.msra.mxu0 %v1579
      %1602 = vmatpush.msra.mxu0 %v1578
      %1603 = vmatpush.msra.mxu0 %v1577
      %1604 = vmatpush.msra.mxu0 %v1576
      %1605 = vmatmul.f32.gmra.mxu0 %v1584
      %v1606 = vpop.f32.mrf.mxu0
      %v1607 = vadd.f32 0.0, %v1606
      %1608 = vdwg.mxu0
      %v1609 = vadd.f32 %v1574, %v1607
      %s1610 = scalar_lea.vmem %s6, 112
      %v1611 = vld [vmem:[%s1610] sm:$0xff]
      %v1612 = vld [vmem:[%s1610 + $0x8] sm:$0xff]
      %v1613 = vld [vmem:[%s1610 + $0x10] sm:$0xff]
      %v1614 = vld [vmem:[%s1610 + $0x18] sm:$0xff]
      %v1615 = vld [vmem:[%s1610 + $0x20] sm:$0xff]
      %v1616 = vld [vmem:[%s1610 + $0x28] sm:$0xff]
      %v1617 = vld [vmem:[%s1610 + $0x30] sm:$0x1]
      %v1618 = vrot.slane %v1537, 2
      %v1619 = vsel %vm432, %v1618, 0
      %v1622 = vsel %vm1550, %v1617, 0
      %1624 = vmatpush.msra.mxu0 0.0
      %1625 = vmatpush.msra.mxu0 0.0
      %1626 = vmatpush.msra.mxu0 0.0
      %1627 = vmatpush.msra.mxu0 0.0
      %1628 = vmatpush.msra.mxu0 0.0
      %1629 = vmatpush.msra.mxu0 0.0
      %1630 = vmatpush.msra.mxu0 0.0
      %1631 = vmatpush.msra.mxu0 0.0
      %1632 = vmatpush.msra.mxu0 0.0
      %1633 = vmatpush.msra.mxu0 %v1622
      %1634 = vmatpush.msra.mxu0 %v1616
      %1635 = vmatpush.msra.mxu0 %v1615
      %1636 = vmatpush.msra.mxu0 %v1614
      %1637 = vmatpush.msra.mxu0 %v1613
      %1638 = vmatpush.msra.mxu0 %v1612
      %1639 = vmatpush.msra.mxu0 %v1611
      %1640 = vmatmul.f32.gmra.mxu0 %v1619
      %v1641 = vpop.f32.mrf.mxu0
      %v1642 = vadd.f32 0.0, %v1641
      %1643 = vdwg.mxu0
      %v1644 = vadd.f32 %v1609, %v1642
      %s1645 = scalar_lea.vmem %s6, 168
      %v1646 = vld [vmem:[%s1645] sm:$0xff]
      %v1647 = vld [vmem:[%s1645 + $0x8] sm:$0xff]
      %v1648 = vld [vmem:[%s1645 + $0x10] sm:$0xff]
      %v1649 = vld [vmem:[%s1645 + $0x18] sm:$0xff]
      %v1650 = vld [vmem:[%s1645 + $0x20] sm:$0xff]
      %v1651 = vld [vmem:[%s1645 + $0x28] sm:$0xff]
      %v1652 = vld [vmem:[%s1645 + $0x30] sm:$0x1]
      %v1653 = vrot.slane %v1537, 3
      %v1654 = vsel %vm432, %v1653, 0
      %v1657 = vsel %vm1550, %v1652, 0
      %1659 = vmatpush.msra.mxu0 0.0
      %1660 = vmatpush.msra.mxu0 0.0
      %1661 = vmatpush.msra.mxu0 0.0
      %1662 = vmatpush.msra.mxu0 0.0
      %1663 = vmatpush.msra.mxu0 0.0
      %1664 = vmatpush.msra.mxu0 0.0
      %1665 = vmatpush.msra.mxu0 0.0
      %1666 = vmatpush.msra.mxu0 0.0
      %1667 = vmatpush.msra.mxu0 0.0
      %1668 = vmatpush.msra.mxu0 %v1657
      %1669 = vmatpush.msra.mxu0 %v1651
      %1670 = vmatpush.msra.mxu0 %v1650
      %1671 = vmatpush.msra.mxu0 %v1649
      %1672 = vmatpush.msra.mxu0 %v1648
      %1673 = vmatpush.msra.mxu0 %v1647
      %1674 = vmatpush.msra.mxu0 %v1646
      %1675 = vmatmul.f32.gmra.mxu0 %v1654
      %v1676 = vpop.f32.mrf.mxu0
      %v1677 = vadd.f32 0.0, %v1676
      %1678 = vdwg.mxu0
      %v1679 = vadd.f32 %v1644, %v1677
      %s1680 = scalar_lea.vmem %s6, 224
      %v1681 = vld [vmem:[%s1680] sm:$0xff]
      %v1682 = vld [vmem:[%s1680 + $0x8] sm:$0xff]
      %v1683 = vld [vmem:[%s1680 + $0x10] sm:$0xff]
      %v1684 = vld [vmem:[%s1680 + $0x18] sm:$0xff]
      %v1685 = vld [vmem:[%s1680 + $0x20] sm:$0xff]
      %v1686 = vld [vmem:[%s1680 + $0x28] sm:$0xff]
      %v1687 = vld [vmem:[%s1680 + $0x30] sm:$0x1]
      %v1688 = vrot.slane %v1537, 4
      %v1689 = vsel %vm432, %v1688, 0
      %v1692 = vsel %vm1550, %v1687, 0
      %1694 = vmatpush.msra.mxu0 0.0
      %1695 = vmatpush.msra.mxu0 0.0
      %1696 = vmatpush.msra.mxu0 0.0
      %1697 = vmatpush.msra.mxu0 0.0
      %1698 = vmatpush.msra.mxu0 0.0
      %1699 = vmatpush.msra.mxu0 0.0
      %1700 = vmatpush.msra.mxu0 0.0
      %1701 = vmatpush.msra.mxu0 0.0
      %1702 = vmatpush.msra.mxu0 0.0
      %1703 = vmatpush.msra.mxu0 %v1692
      %1704 = vmatpush.msra.mxu0 %v1686
      %1705 = vmatpush.msra.mxu0 %v1685
      %1706 = vmatpush.msra.mxu0 %v1684
      %1707 = vmatpush.msra.mxu0 %v1683
      %1708 = vmatpush.msra.mxu0 %v1682
      %1709 = vmatpush.msra.mxu0 %v1681
      %1710 = vmatmul.f32.gmra.mxu0 %v1689
      %v1711 = vpop.f32.mrf.mxu0
      %v1712 = vadd.f32 0.0, %v1711
      %1713 = vdwg.mxu0
      %v1714 = vadd.f32 %v1679, %v1712
      %s1715 = scalar_lea.vmem %s6, 280
      %v1716 = vld [vmem:[%s1715] sm:$0xff]
      %v1717 = vld [vmem:[%s1715 + $0x8] sm:$0xff]
      %v1718 = vld [vmem:[%s1715 + $0x10] sm:$0xff]
      %v1719 = vld [vmem:[%s1715 + $0x18] sm:$0xff]
      %v1720 = vld [vmem:[%s1715 + $0x20] sm:$0xff]
      %v1721 = vld [vmem:[%s1715 + $0x28] sm:$0xff]
      %v1722 = vld [vmem:[%s1715 + $0x30] sm:$0x1]
      %v1723 = vrot.slane %v1537, 5
      %v1724 = vsel %vm432, %v1723, 0
      %v1727 = vsel %vm1550, %v1722, 0
      %1729 = vmatpush.msra.mxu0 0.0
      %1730 = vmatpush.msra.mxu0 0.0
      %1731 = vmatpush.msra.mxu0 0.0
      %1732 = vmatpush.msra.mxu0 0.0
      %1733 = vmatpush.msra.mxu0 0.0
      %1734 = vmatpush.msra.mxu0 0.0
      %1735 = vmatpush.msra.mxu0 0.0
      %1736 = vmatpush.msra.mxu0 0.0
      %1737 = vmatpush.msra.mxu0 0.0
      %1738 = vmatpush.msra.mxu0 %v1727
      %1739 = vmatpush.msra.mxu0 %v1721
      %1740 = vmatpush.msra.mxu0 %v1720
      %1741 = vmatpush.msra.mxu0 %v1719
      %1742 = vmatpush.msra.mxu0 %v1718
      %1743 = vmatpush.msra.mxu0 %v1717
      %1744 = vmatpush.msra.mxu0 %v1716
      %1745 = vmatmul.f32.gmra.mxu0 %v1724
      %v1746 = vpop.f32.mrf.mxu0
      %v1747 = vadd.f32 0.0, %v1746
      %1748 = vdwg.mxu0
      %v1749 = vadd.f32 %v1714, %v1747
      %s1750 = scalar_lea.vmem %s6, 336
      %v1751 = vld [vmem:[%s1750] sm:$0xff]
      %v1752 = vld [vmem:[%s1750 + $0x8] sm:$0xff]
      %v1753 = vld [vmem:[%s1750 + $0x10] sm:$0xff]
      %v1754 = vld [vmem:[%s1750 + $0x18] sm:$0xff]
      %v1755 = vld [vmem:[%s1750 + $0x20] sm:$0xff]
      %v1756 = vld [vmem:[%s1750 + $0x28] sm:$0xff]
      %v1757 = vld [vmem:[%s1750 + $0x30] sm:$0x1]
      %v1758 = vrot.slane %v1537, 6
      %v1759 = vsel %vm432, %v1758, 0
      %v1762 = vsel %vm1550, %v1757, 0
      %1764 = vmatpush.msra.mxu0 0.0
      %1765 = vmatpush.msra.mxu0 0.0
      %1766 = vmatpush.msra.mxu0 0.0
      %1767 = vmatpush.msra.mxu0 0.0
      %1768 = vmatpush.msra.mxu0 0.0
      %1769 = vmatpush.msra.mxu0 0.0
      %1770 = vmatpush.msra.mxu0 0.0
      %1771 = vmatpush.msra.mxu0 0.0
      %1772 = vmatpush.msra.mxu0 0.0
      %1773 = vmatpush.msra.mxu0 %v1762
      %1774 = vmatpush.msra.mxu0 %v1756
      %1775 = vmatpush.msra.mxu0 %v1755
      %1776 = vmatpush.msra.mxu0 %v1754
      %1777 = vmatpush.msra.mxu0 %v1753
      %1778 = vmatpush.msra.mxu0 %v1752
      %1779 = vmatpush.msra.mxu0 %v1751
      %1780 = vmatmul.f32.gmra.mxu0 %v1759
      %v1781 = vpop.f32.mrf.mxu0
      %v1782 = vadd.f32 0.0, %v1781
      %1783 = vdwg.mxu0
      %v1784 = vadd.f32 %v1749, %v1782
      %s1785 = scalar_lea.vmem %s6, 392
      %v1786 = vld [vmem:[%s1785] sm:$0xff]
      %v1787 = vld [vmem:[%s1785 + $0x8] sm:$0xff]
      %v1788 = vld [vmem:[%s1785 + $0x10] sm:$0xff]
      %v1789 = vld [vmem:[%s1785 + $0x18] sm:$0xff]
      %v1790 = vld [vmem:[%s1785 + $0x20] sm:$0xff]
      %v1791 = vld [vmem:[%s1785 + $0x28] sm:$0xff]
      %v1792 = vld [vmem:[%s1785 + $0x30] sm:$0x1]
      %v1793 = vrot.slane %v1537, 7
      %v1794 = vsel %vm432, %v1793, 0
      %v1797 = vsel %vm1550, %v1792, 0
      %1799 = vmatpush.msra.mxu0 0.0
      %1800 = vmatpush.msra.mxu0 0.0
      %1801 = vmatpush.msra.mxu0 0.0
      %1802 = vmatpush.msra.mxu0 0.0
      %1803 = vmatpush.msra.mxu0 0.0
      %1804 = vmatpush.msra.mxu0 0.0
      %1805 = vmatpush.msra.mxu0 0.0
      %1806 = vmatpush.msra.mxu0 0.0
      %1807 = vmatpush.msra.mxu0 0.0
      %1808 = vmatpush.msra.mxu0 %v1797
      %1809 = vmatpush.msra.mxu0 %v1791
      %1810 = vmatpush.msra.mxu0 %v1790
      %1811 = vmatpush.msra.mxu0 %v1789
      %1812 = vmatpush.msra.mxu0 %v1788
      %1813 = vmatpush.msra.mxu0 %v1787
      %1814 = vmatpush.msra.mxu0 %v1786
      %1815 = vmatmul.f32.gmra.mxu0 %v1794
      %v1816 = vpop.f32.mrf.mxu0
      %v1817 = vadd.f32 0.0, %v1816
      %1818 = vdwg.mxu0
      %v1819 = vadd.f32 %v1784, %v1817
      %s1820 = scalar_lea.vmem %s6, 448
      %v1821 = vld [vmem:[%s1820] sm:$0xff]
      %v1822 = vld [vmem:[%s1820 + $0x8] sm:$0xff]
      %v1823 = vld [vmem:[%s1820 + $0x10] sm:$0xff]
      %v1824 = vld [vmem:[%s1820 + $0x18] sm:$0xff]
      %v1825 = vld [vmem:[%s1820 + $0x20] sm:$0xff]
      %v1826 = vld [vmem:[%s1820 + $0x28] sm:$0xff]
      %v1827 = vld [vmem:[%s1820 + $0x30] sm:$0x1]
      %v1829 = vsel %vm432, %v1538, 0
      %v1832 = vsel %vm1550, %v1827, 0
      %1834 = vmatpush.msra.mxu0 0.0
      %1835 = vmatpush.msra.mxu0 0.0
      %1836 = vmatpush.msra.mxu0 0.0
      %1837 = vmatpush.msra.mxu0 0.0
      %1838 = vmatpush.msra.mxu0 0.0
      %1839 = vmatpush.msra.mxu0 0.0
      %1840 = vmatpush.msra.mxu0 0.0
      %1841 = vmatpush.msra.mxu0 0.0
      %1842 = vmatpush.msra.mxu0 0.0
      %1843 = vmatpush.msra.mxu0 %v1832
      %1844 = vmatpush.msra.mxu0 %v1826
      %1845 = vmatpush.msra.mxu0 %v1825
      %1846 = vmatpush.msra.mxu0 %v1824
      %1847 = vmatpush.msra.mxu0 %v1823
      %1848 = vmatpush.msra.mxu0 %v1822
      %1849 = vmatpush.msra.mxu0 %v1821
      %1850 = vmatmul.f32.gmra.mxu0 %v1829
      %v1851 = vpop.f32.mrf.mxu0
      %v1852 = vadd.f32 0.0, %v1851
      %1853 = vdwg.mxu0
      %v1854 = vadd.f32 %v1819, %v1852
      %s1855 = scalar_lea.vmem %s6, 504
      %v1856 = vld [vmem:[%s1855] sm:$0xff]
      %v1857 = vld [vmem:[%s1855 + $0x8] sm:$0xff]
      %v1858 = vld [vmem:[%s1855 + $0x10] sm:$0xff]
      %v1859 = vld [vmem:[%s1855 + $0x18] sm:$0xff]
      %v1860 = vld [vmem:[%s1855 + $0x20] sm:$0xff]
      %v1861 = vld [vmem:[%s1855 + $0x28] sm:$0xff]
      %v1862 = vld [vmem:[%s1855 + $0x30] sm:$0x1]
      %v1863 = vrot.slane %v1538, 1
      %v1864 = vsel %vm432, %v1863, 0
      %v1867 = vsel %vm1550, %v1862, 0
      %1869 = vmatpush.msra.mxu0 0.0
      %1870 = vmatpush.msra.mxu0 0.0
      %1871 = vmatpush.msra.mxu0 0.0
      %1872 = vmatpush.msra.mxu0 0.0
      %1873 = vmatpush.msra.mxu0 0.0
      %1874 = vmatpush.msra.mxu0 0.0
      %1875 = vmatpush.msra.mxu0 0.0
      %1876 = vmatpush.msra.mxu0 0.0
      %1877 = vmatpush.msra.mxu0 0.0
      %1878 = vmatpush.msra.mxu0 %v1867
      %1879 = vmatpush.msra.mxu0 %v1861
      %1880 = vmatpush.msra.mxu0 %v1860
      %1881 = vmatpush.msra.mxu0 %v1859
      %1882 = vmatpush.msra.mxu0 %v1858
      %1883 = vmatpush.msra.mxu0 %v1857
      %1884 = vmatpush.msra.mxu0 %v1856
      %1885 = vmatmul.f32.gmra.mxu0 %v1864
      %v1886 = vpop.f32.mrf.mxu0
      %v1887 = vadd.f32 0.0, %v1886
      %1888 = vdwg.mxu0
      %v1889 = vadd.f32 %v1854, %v1887
      %s1890 = scalar_lea.vmem %s6, 560
      %v1891 = vld [vmem:[%s1890] sm:$0xff]
      %v1892 = vld [vmem:[%s1890 + $0x8] sm:$0xff]
      %v1893 = vld [vmem:[%s1890 + $0x10] sm:$0xff]
      %v1894 = vld [vmem:[%s1890 + $0x18] sm:$0xff]
      %v1895 = vld [vmem:[%s1890 + $0x20] sm:$0xff]
      %v1896 = vld [vmem:[%s1890 + $0x28] sm:$0xff]
      %v1897 = vld [vmem:[%s1890 + $0x30] sm:$0x1]
      %v1898 = vrot.slane %v1538, 2
      %v1899 = vsel %vm432, %v1898, 0
      %v1902 = vsel %vm1550, %v1897, 0
      %1904 = vmatpush.msra.mxu0 0.0
      %1905 = vmatpush.msra.mxu0 0.0
      %1906 = vmatpush.msra.mxu0 0.0
      %1907 = vmatpush.msra.mxu0 0.0
      %1908 = vmatpush.msra.mxu0 0.0
      %1909 = vmatpush.msra.mxu0 0.0
      %1910 = vmatpush.msra.mxu0 0.0
      %1911 = vmatpush.msra.mxu0 0.0
      %1912 = vmatpush.msra.mxu0 0.0
      %1913 = vmatpush.msra.mxu0 %v1902
      %1914 = vmatpush.msra.mxu0 %v1896
      %1915 = vmatpush.msra.mxu0 %v1895
      %1916 = vmatpush.msra.mxu0 %v1894
      %1917 = vmatpush.msra.mxu0 %v1893
      %1918 = vmatpush.msra.mxu0 %v1892
      %1919 = vmatpush.msra.mxu0 %v1891
      %1920 = vmatmul.f32.gmra.mxu0 %v1899
      %v1921 = vpop.f32.mrf.mxu0
      %v1922 = vadd.f32 0.0, %v1921
      %1923 = vdwg.mxu0
      %v1924 = vadd.f32 %v1889, %v1922
      %s1925 = scalar_lea.vmem %s6, 616
      %v1926 = vld [vmem:[%s1925] sm:$0xff]
      %v1927 = vld [vmem:[%s1925 + $0x8] sm:$0xff]
      %v1928 = vld [vmem:[%s1925 + $0x10] sm:$0xff]
      %v1929 = vld [vmem:[%s1925 + $0x18] sm:$0xff]
      %v1930 = vld [vmem:[%s1925 + $0x20] sm:$0xff]
      %v1931 = vld [vmem:[%s1925 + $0x28] sm:$0xff]
      %v1932 = vld [vmem:[%s1925 + $0x30] sm:$0x1]
      %v1933 = vrot.slane %v1538, 3
      %v1934 = vsel %vm432, %v1933, 0
      %v1937 = vsel %vm1550, %v1932, 0
      %1939 = vmatpush.msra.mxu0 0.0
      %1940 = vmatpush.msra.mxu0 0.0
      %1941 = vmatpush.msra.mxu0 0.0
      %1942 = vmatpush.msra.mxu0 0.0
      %1943 = vmatpush.msra.mxu0 0.0
      %1944 = vmatpush.msra.mxu0 0.0
      %1945 = vmatpush.msra.mxu0 0.0
      %1946 = vmatpush.msra.mxu0 0.0
      %1947 = vmatpush.msra.mxu0 0.0
      %1948 = vmatpush.msra.mxu0 %v1937
      %1949 = vmatpush.msra.mxu0 %v1931
      %1950 = vmatpush.msra.mxu0 %v1930
      %1951 = vmatpush.msra.mxu0 %v1929
      %1952 = vmatpush.msra.mxu0 %v1928
      %1953 = vmatpush.msra.mxu0 %v1927
      %1954 = vmatpush.msra.mxu0 %v1926
      %1955 = vmatmul.f32.gmra.mxu0 %v1934
      %v1956 = vpop.f32.mrf.mxu0
      %v1957 = vadd.f32 0.0, %v1956
      %1958 = vdwg.mxu0
      %v1959 = vadd.f32 %v1924, %v1957
      %s1960 = scalar_lea.vmem %s6, 672
      %v1961 = vld [vmem:[%s1960] sm:$0xff]
      %v1962 = vld [vmem:[%s1960 + $0x8] sm:$0xff]
      %v1963 = vld [vmem:[%s1960 + $0x10] sm:$0xff]
      %v1964 = vld [vmem:[%s1960 + $0x18] sm:$0xff]
      %v1965 = vld [vmem:[%s1960 + $0x20] sm:$0xff]
      %v1966 = vld [vmem:[%s1960 + $0x28] sm:$0xff]
      %v1967 = vld [vmem:[%s1960 + $0x30] sm:$0x1]
      %v1968 = vrot.slane %v1538, 4
      %v1969 = vsel %vm432, %v1968, 0
      %v1972 = vsel %vm1550, %v1967, 0
      %1974 = vmatpush.msra.mxu0 0.0
      %1975 = vmatpush.msra.mxu0 0.0
      %1976 = vmatpush.msra.mxu0 0.0
      %1977 = vmatpush.msra.mxu0 0.0
      %1978 = vmatpush.msra.mxu0 0.0
      %1979 = vmatpush.msra.mxu0 0.0
      %1980 = vmatpush.msra.mxu0 0.0
      %1981 = vmatpush.msra.mxu0 0.0
      %1982 = vmatpush.msra.mxu0 0.0
      %1983 = vmatpush.msra.mxu0 %v1972
      %1984 = vmatpush.msra.mxu0 %v1966
      %1985 = vmatpush.msra.mxu0 %v1965
      %1986 = vmatpush.msra.mxu0 %v1964
      %1987 = vmatpush.msra.mxu0 %v1963
      %1988 = vmatpush.msra.mxu0 %v1962
      %1989 = vmatpush.msra.mxu0 %v1961
      %1990 = vmatmul.f32.gmra.mxu0 %v1969
      %v1991 = vpop.f32.mrf.mxu0
      %v1992 = vadd.f32 0.0, %v1991
      %1993 = vdwg.mxu0
      %v1994 = vadd.f32 %v1959, %v1992
      %s1995 = scalar_lea.vmem %s6, 728
      %v1996 = vld [vmem:[%s1995] sm:$0xff]
      %v1997 = vld [vmem:[%s1995 + $0x8] sm:$0xff]
      %v1998 = vld [vmem:[%s1995 + $0x10] sm:$0xff]
      %v1999 = vld [vmem:[%s1995 + $0x18] sm:$0xff]
      %v2000 = vld [vmem:[%s1995 + $0x20] sm:$0xff]
      %v2001 = vld [vmem:[%s1995 + $0x28] sm:$0xff]
      %v2002 = vld [vmem:[%s1995 + $0x30] sm:$0x1]
      %v2003 = vrot.slane %v1538, 5
      %v2004 = vsel %vm432, %v2003, 0
      %v2007 = vsel %vm1550, %v2002, 0
      %2009 = vmatpush.msra.mxu0 0.0
      %2010 = vmatpush.msra.mxu0 0.0
      %2011 = vmatpush.msra.mxu0 0.0
      %2012 = vmatpush.msra.mxu0 0.0
      %2013 = vmatpush.msra.mxu0 0.0
      %2014 = vmatpush.msra.mxu0 0.0
      %2015 = vmatpush.msra.mxu0 0.0
      %2016 = vmatpush.msra.mxu0 0.0
      %2017 = vmatpush.msra.mxu0 0.0
      %2018 = vmatpush.msra.mxu0 %v2007
      %2019 = vmatpush.msra.mxu0 %v2001
      %2020 = vmatpush.msra.mxu0 %v2000
      %2021 = vmatpush.msra.mxu0 %v1999
      %2022 = vmatpush.msra.mxu0 %v1998
      %2023 = vmatpush.msra.mxu0 %v1997
      %2024 = vmatpush.msra.mxu0 %v1996
      %2025 = vmatmul.f32.gmra.mxu0 %v2004
      %v2026 = vpop.f32.mrf.mxu0
      %v2027 = vadd.f32 0.0, %v2026
      %2028 = vdwg.mxu0
      %v2029 = vadd.f32 %v1994, %v2027
      %s2030 = scalar_lea.vmem %s6, 784
      %v2031 = vld [vmem:[%s2030] sm:$0xff]
      %v2032 = vld [vmem:[%s2030 + $0x8] sm:$0xff]
      %v2033 = vld [vmem:[%s2030 + $0x10] sm:$0xff]
      %v2034 = vld [vmem:[%s2030 + $0x18] sm:$0xff]
      %v2035 = vld [vmem:[%s2030 + $0x20] sm:$0xff]
      %v2036 = vld [vmem:[%s2030 + $0x28] sm:$0xff]
      %v2037 = vld [vmem:[%s2030 + $0x30] sm:$0x1]
      %v2038 = vrot.slane %v1538, 6
      %v2039 = vsel %vm432, %v2038, 0
      %v2042 = vsel %vm1550, %v2037, 0
      %2044 = vmatpush.msra.mxu0 0.0
      %2045 = vmatpush.msra.mxu0 0.0
      %2046 = vmatpush.msra.mxu0 0.0
      %2047 = vmatpush.msra.mxu0 0.0
      %2048 = vmatpush.msra.mxu0 0.0
      %2049 = vmatpush.msra.mxu0 0.0
      %2050 = vmatpush.msra.mxu0 0.0
      %2051 = vmatpush.msra.mxu0 0.0
      %2052 = vmatpush.msra.mxu0 0.0
      %2053 = vmatpush.msra.mxu0 %v2042
      %2054 = vmatpush.msra.mxu0 %v2036
      %2055 = vmatpush.msra.mxu0 %v2035
      %2056 = vmatpush.msra.mxu0 %v2034
      %2057 = vmatpush.msra.mxu0 %v2033
      %2058 = vmatpush.msra.mxu0 %v2032
      %2059 = vmatpush.msra.mxu0 %v2031
      %2060 = vmatmul.f32.gmra.mxu0 %v2039
      %v2061 = vpop.f32.mrf.mxu0
      %v2062 = vadd.f32 0.0, %v2061
      %2063 = vdwg.mxu0
      %v2064 = vadd.f32 %v2029, %v2062
      %s2065 = scalar_lea.vmem %s6, 840
      %v2066 = vld [vmem:[%s2065] sm:$0xff]
      %v2067 = vld [vmem:[%s2065 + $0x8] sm:$0xff]
      %v2068 = vld [vmem:[%s2065 + $0x10] sm:$0xff]
      %v2069 = vld [vmem:[%s2065 + $0x18] sm:$0xff]
      %v2070 = vld [vmem:[%s2065 + $0x20] sm:$0xff]
      %v2071 = vld [vmem:[%s2065 + $0x28] sm:$0xff]
      %v2072 = vld [vmem:[%s2065 + $0x30] sm:$0x1]
      %v2073 = vrot.slane %v1538, 7
      %v2074 = vsel %vm432, %v2073, 0
      %v2077 = vsel %vm1550, %v2072, 0
      %2079 = vmatpush.msra.mxu0 0.0
      %2080 = vmatpush.msra.mxu0 0.0
      %2081 = vmatpush.msra.mxu0 0.0
      %2082 = vmatpush.msra.mxu0 0.0
      %2083 = vmatpush.msra.mxu0 0.0
      %2084 = vmatpush.msra.mxu0 0.0
      %2085 = vmatpush.msra.mxu0 0.0
      %2086 = vmatpush.msra.mxu0 0.0
      %2087 = vmatpush.msra.mxu0 0.0
      %2088 = vmatpush.msra.mxu0 %v2077
      %2089 = vmatpush.msra.mxu0 %v2071
      %2090 = vmatpush.msra.mxu0 %v2070
      %2091 = vmatpush.msra.mxu0 %v2069
      %2092 = vmatpush.msra.mxu0 %v2068
      %2093 = vmatpush.msra.mxu0 %v2067
      %2094 = vmatpush.msra.mxu0 %v2066
      %2095 = vmatmul.f32.gmra.mxu0 %v2074
      %v2096 = vpop.f32.mrf.mxu0
      %v2097 = vadd.f32 0.0, %v2096
      %2098 = vdwg.mxu0
      %v2099 = vadd.f32 %v2064, %v2097
      %vm2100 = vcmask 253952
      %2101 = vst.msk [vmem:[%s301] sm:$0x1] %vm2100, %v2099
      %p2102 = scmp.lt.s32.totalorder %s19, 1
      %s2103 = scalar_select %p2102, %s19, 1
      %s2104 = scalar_lea.vmem %s8, %s2103
      // Predicated region
      $region53: #{encoder_forward.1} parent=51 // pred_check
        %p2105 = pneg %p210
      $region54: #{encoder_forward.1} parent=51 // pred_check_branch
        %2107 = sbr.rel (%p2105) target = $region56
      $region55: #{encoder_forward.1} parent=51 // pred_region
        _
      $region56: #{encoder_forward.1} parent=51 // pred_fallthru
        _
    $region52: #{encoder_forward.1} parent=5 // pred_fallthru
      _
    %p2108 = scmp.le.s32.totalorder 2, %s14
    // Predicated region
    $region57: #{encoder_forward.1} parent=5 // pred_check
      %p2109 = pneg %p2108
    $region58: #{encoder_forward.1} parent=5 // pred_check_branch
      %2111 = sbr.rel (%p2109) target = $region60
    $region59: #{encoder_forward.1} parent=5 // pred_region
      %s2112 = ssub.s32 %s14, 2
      // Predicated region
      $region61: #{encoder_forward.1} parent=59 // pred_check
        %p2113 = pneg %p216
      $region62: #{encoder_forward.1} parent=59 // pred_check_branch
        %2115 = sbr.rel (%p2113) target = $region64
      $region63: #{encoder_forward.1} parent=59 // pred_region
        %p2116 = scmp.lt.s32.totalorder %s20, 1
        %s2117 = scalar_select %p2116, %s20, 1
        %s2118 = scalar_lea.vmem %s8, %s2117
      $region64: #{encoder_forward.1} parent=59 // pred_fallthru
        _
    $region60: #{encoder_forward.1} parent=5 // pred_fallthru
      _
  $region6: #{encoder_forward.1} parent=0 // loop_footer
    %s18 = sadd.s32 1, %s14
  $region7: #{encoder_forward.1} parent=0 // loop_footer_branch
    %13 = sbr.rel target = $region3
  $region8: #{encoder_forward.1} parent=0 // loop_exit
    _

</llo_original>
